<compile_context>
chip_gen: v5e
topology: v5e:2x2
jax: 0.10.0
libtpu: 0.0.40
codegen_flags: <defaults>
</compile_context>

<pallas_src>
import functools

import jax
import jax.numpy as jnp
from jax.experimental import pallas as pl
from jax.experimental.pallas import tpu as pltpu


def _graph_norm_kernel(x_ref, batch_ref, alpha_ref, weight_ref, bias_ref,
                       o_ref, stats_ref, gstats_ref,
                       *, n_rows, g_pad, tn, d, eps):
    p = pl.program_id(0)   # phase: 0 = accumulate stats, 1 = normalize
    i = pl.program_id(1)   # node-tile index

    # Shared for both phases: node tile, graph ids, one-hot membership.
    x = x_ref[...].astype(jnp.float32)                              # [tn, d]
    b = batch_ref[...]                                              # [tn, 1]
    row = i * tn + jax.lax.broadcasted_iota(jnp.int32, (tn, 1), 0)  # [tn, 1]
    valid = row < n_rows                                            # mask tail
    gid = jax.lax.broadcasted_iota(jnp.int32, (tn, g_pad), 1)       # [tn, g]
    onehot = ((gid == b) & valid).astype(jnp.float32)               # [tn, g]

    # ---------------- phase 0: per-graph segment sums ----------------
    @pl.when((p == 0) & (i == 0))
    def _():
        stats_ref[...] = jnp.zeros_like(stats_ref)

    @pl.when(p == 0)
    def _():
        # one fused MXU pass: onehot^T @ [x | x*x | 1]  -> [g, 2d+1]
        xcat = jnp.concatenate(
            [x, x * x, jnp.ones((tn, 1), jnp.float32)], axis=-1)
        stats_ref[...] += jax.lax.dot_general(
            onehot, xcat, (((0,), (0,)), ((), ())),
            preferred_element_type=jnp.float32)

    # -------- phase 1, first tile: finalize graph-level stats --------
    @pl.when((p == 1) & (i == 0))
    def _():
        stats = stats_ref[...]                                      # [g, 2d+1]
        inv_cnt = 1.0 / jnp.maximum(stats[:, 2 * d:2 * d + 1], 1.0)  # [g, 1]
        mean_g = stats[:, :d] * inv_cnt                             # [g, d]
        ex2_g = stats[:, d:2 * d] * inv_cnt                         # [g, d]
        a = alpha_ref[...]                                          # [1, d]
        # scatter_mean((x - a*mean)^2) == E[x^2] - (2a - a^2) * mean^2
        sigma2_g = ex2_g - (2.0 * a - a * a) * (mean_g * mean_g) + eps
        gstats_ref[...] = jnp.concatenate(
            [mean_g, jax.lax.rsqrt(sigma2_g)], axis=-1)             # [g, 2d]

    # ---------------- phase 1: normalize this node tile ---------------
    @pl.when(p == 1)
    def _():
        # single fused gather matmul: onehot @ [mean_g | rstd_g] -> [tn, 2d]
        gath = jnp.dot(onehot, gstats_ref[...],
                       preferred_element_type=jnp.float32)
        mean_n = gath[:, :d]
        rstd_n = gath[:, d:]
        shifted = x - alpha_ref[...] * mean_n
        out = weight_ref[...] * shifted * rstd_n + bias_ref[...]
        o_ref[...] = out.astype(o_ref.dtype)


def graph_norm(x, batch, alpha, weight, bias, num_graphs, *,
               eps=1e-9, block_n=256):
    n, d = x.shape
    tn = n if n <= block_n else block_n
    num_tiles = pl.cdiv(n, tn)
    g_pad = ((num_graphs + 7) // 8) * 8          # sublane-friendly scratch
    batch2d = batch.reshape(n, 1).astype(jnp.int32)

    kernel = functools.partial(
        _graph_norm_kernel, n_rows=n, g_pad=g_pad, tn=tn, d=d, eps=eps)

    row_spec = pl.BlockSpec((tn, d), lambda p, i: (i, 0))
    vec_spec = pl.BlockSpec((1, d), lambda p, i: (0, 0))

    return pl.pallas_call(
        kernel,
        out_shape=jax.ShapeDtypeStruct((n, d), x.dtype),
        grid=(2, num_tiles),
        in_specs=[
            row_spec,                                     # x tiles
            pl.BlockSpec((tn, 1), lambda p, i: (i, 0)),   # batch tiles
            vec_spec, vec_spec, vec_spec,                 # alpha, weight, bias
        ],
        # stay on block (0,0) during phase 0 (never written back), then walk
        # the tiles during phase 1 -> no garbage / duplicate HBM writes.
        out_specs=pl.BlockSpec((tn, d), lambda p, i: (i * p, 0)),
        scratch_shapes=[
            pltpu.VMEM((g_pad, 2 * d + 1), jnp.float32),  # [sum_x|sum_x2|cnt]
            pltpu.VMEM((g_pad, 2 * d), jnp.float32),      # [mean_g | rstd_g]
        ],
        compiler_params=pltpu.CompilerParams(
            dimension_semantics=("arbitrary", "arbitrary"),
            vmem_limit_bytes=32 * 1024 * 1024),
    )(x, batch2d,
      alpha.reshape(1, d).astype(jnp.float32),
      weight.reshape(1, d).astype(jnp.float32),
      bias.reshape(1, d).astype(jnp.float32))


def _reference(x, batch, alpha, weight, bias, num_graphs, eps=1e-9):
    counts = jnp.maximum(
        jax.ops.segment_sum(jnp.ones((x.shape[0],)), batch, num_graphs), 1.0)
    mean_g = jax.ops.segment_sum(x, batch, num_graphs) / counts[:, None]
    shifted = x - alpha[None, :] * mean_g[batch]
    sigma2_g = (jax.ops.segment_sum(shifted ** 2, batch, num_graphs)
                / counts[:, None]) + eps
    return weight[None, :] * shifted / jnp.sqrt(sigma2_g[batch]) + bias[None, :]


if __name__ == "__main__":
    key = jax.random.PRNGKey(0)
    N, D, G = 1024, 128, 4          # nodes, hidden_dim (lane-dense), graphs
    kx, kb = jax.random.split(key)
    x = jax.random.normal(kx, (N, D), dtype=jnp.float32)
    batch = jnp.sort(jax.random.randint(kb, (N,), 0, G)).astype(jnp.int32)

    # deterministic parameter init, matching nn.Parameter(torch.ones/zeros)
    alpha = jnp.ones((D,), jnp.float32)
    weight = jnp.ones((D,), jnp.float32)
    bias = jnp.zeros((D,), jnp.float32)

    out = graph_norm(x, batch, alpha, weight, bias, num_graphs=G, block_n=256)
    out = jax.block_until_ready(out)

    ref = _reference(x, batch, alpha, weight, bias, G)
    assert jnp.allclose(out, ref, atol=1e-4, rtol=1e-4), \
        float(jnp.max(jnp.abs(out - ref)))

    print("KERNEL_OK")
</pallas_src>

<mosaic_0001>
module attributes {stable_mosaic.version = 11 : i64} {
  func.func @_graph_norm_kernel(%arg0: i32, %arg1: i32, %arg2: memref<256x128xf32, #tpu.memory_space<vmem>>, %arg3: memref<256x1xi32, #tpu.memory_space<vmem>>, %arg4: memref<1x128xf32, #tpu.memory_space<vmem>>, %arg5: memref<1x128xf32, #tpu.memory_space<vmem>>, %arg6: memref<1x128xf32, #tpu.memory_space<vmem>>, %arg7: memref<256x128xf32, #tpu.memory_space<vmem>>, %arg8: memref<8x257xf32, #tpu.memory_space<vmem>>, %arg9: memref<8x256xf32, #tpu.memory_space<vmem>>) attributes {dimension_semantics = [#tpu.dimension_semantics<arbitrary>, #tpu.dimension_semantics<arbitrary>], iteration_bounds = array<i64: 2, 4>, scalar_prefetch = 0 : i64, scratch_operands = 2 : i64, tpu.core_type = #tpu.core_type<tc>, window_params = [{transform_indices = @transform_0, window_bounds = array<i64: 256, 128>}, {transform_indices = @transform_1, window_bounds = array<i64: 256, 1>}, {pipeline_mode = #tpu.pipeline_mode<synchronous>, transform_indices = @transform_2, window_bounds = array<i64: 1, 128>}, {pipeline_mode = #tpu.pipeline_mode<synchronous>, transform_indices = @transform_3, window_bounds = array<i64: 1, 128>}, {pipeline_mode = #tpu.pipeline_mode<synchronous>, transform_indices = @transform_4, window_bounds = array<i64: 1, 128>}, {transform_indices = @transform_5, window_bounds = array<i64: 256, 128>}]} {
    %c0 = arith.constant 0 : index
    %c0_0 = arith.constant 0 : index
    %0 = vector.load %arg2[%c0, %c0_0] : memref<256x128xf32, #tpu.memory_space<vmem>>, vector<256x128xf32>
    %c0_1 = arith.constant 0 : index
    %c0_2 = arith.constant 0 : index
    %1 = vector.load %arg3[%c0_1, %c0_2] : memref<256x1xi32, #tpu.memory_space<vmem>>, vector<256x1xi32>
    %c256_i32 = arith.constant 256 : i32
    %2 = arith.muli %arg1, %c256_i32 : i32
    %3 = tpu.iota {dimensions = array<i32: 0>} : vector<256x1xi32>
    %4 = vector.broadcast %2 : i32 to vector<256x1xi32>
    %5 = arith.addi %4, %3 : vector<256x1xi32>
    %c1024_i32 = arith.constant 1024 : i32
    %6 = vector.broadcast %c1024_i32 : i32 to vector<256x1xi32>
    %7 = arith.cmpi slt, %5, %6 : vector<256x1xi32>
    %8 = tpu.iota {dimensions = array<i32: 1>} : vector<256x8xi32>
    %9 = vector.broadcast %1 : vector<256x1xi32> to vector<256x8xi32>
    %10 = arith.cmpi eq, %8, %9 : vector<256x8xi32>
    %11 = vector.broadcast %7 : vector<256x1xi1> to vector<256x8xi1>
    %12 = arith.andi %10, %11 : vector<256x8xi1>
    %13 = arith.extui %12 : vector<256x8xi1> to vector<256x8xi32>
    %14 = arith.sitofp %13 : vector<256x8xi32> to vector<256x8xf32>
    %c0_i32 = arith.constant 0 : i32
    %15 = arith.cmpi eq, %arg0, %c0_i32 : i32
    %c0_i32_3 = arith.constant 0 : i32
    %16 = arith.cmpi eq, %arg1, %c0_i32_3 : i32
    %17 = arith.andi %15, %16 : i1
    %18 = arith.extui %17 : i1 to i32
    %c0_i32_4 = arith.constant 0 : i32
    %19 = arith.cmpi ne, %18, %c0_i32_4 : i32
    scf.if %19 {
      %cst = arith.constant 0.000000e+00 : f32
      %31 = vector.broadcast %cst : f32 to vector<8x257xf32>
      %c0_11 = arith.constant 0 : index
      %c0_12 = arith.constant 0 : index
      %32 = vector.load %arg8[%c0_11, %c0_12] : memref<8x257xf32, #tpu.memory_space<vmem>>, vector<8x257xf32>
      tpu.vector_store %arg8[%c0_11, %c0_12], %31 {strides = array<i32>} : memref<8x257xf32, #tpu.memory_space<vmem>>, vector<8x257xf32>,
    } else {
    }
    %c0_i32_5 = arith.constant 0 : i32
    %20 = arith.cmpi eq, %arg0, %c0_i32_5 : i32
    %21 = arith.extui %20 : i1 to i32
    %c0_i32_6 = arith.constant 0 : i32
    %22 = arith.cmpi ne, %21, %c0_i32_6 : i32
    scf.if %22 {
      %31 = arith.mulf %0, %0 : vector<256x128xf32>
      %cst = arith.constant 1.000000e+00 : f32
      %32 = vector.broadcast %cst : f32 to vector<256x1xf32>
      %33 = tpu.concatenate %0, %31, %32 in 1 : vector<256x128xf32>, vector<256x128xf32>, vector<256x1xf32> -> vector<256x257xf32>
      %c0_11 = arith.constant 0 : index
      %c0_12 = arith.constant 0 : index
      %34 = vector.load %arg8[%c0_11, %c0_12] : memref<8x257xf32, #tpu.memory_space<vmem>>, vector<8x257xf32>
      %cst_13 = arith.constant dense<0.000000e+00> : vector<8x257xf32>
      %35 = tpu.matmul %14, %33, %cst_13 {dimension_numbers = #tpu.dot_dimension_numbers<[0], [0], [1], [1], [0, 1, 1, 1], [], []>} : vector<256x8xf32>, vector<256x257xf32>, vector<8x257xf32> -> vector<8x257xf32>
      %36 = arith.addf %34, %35 : vector<8x257xf32>
      %c0_14 = arith.constant 0 : index
      %c0_15 = arith.constant 0 : index
      %37 = vector.load %arg8[%c0_14, %c0_15] : memref<8x257xf32, #tpu.memory_space<vmem>>, vector<8x257xf32>
      tpu.vector_store %arg8[%c0_14, %c0_15], %36 {strides = array<i32>} : memref<8x257xf32, #tpu.memory_space<vmem>>, vector<8x257xf32>,
    } else {
    }
    %c1_i32 = arith.constant 1 : i32
    %23 = arith.cmpi eq, %arg0, %c1_i32 : i32
    %c0_i32_7 = arith.constant 0 : i32
    %24 = arith.cmpi eq, %arg1, %c0_i32_7 : i32
    %25 = arith.andi %23, %24 : i1
    %26 = arith.extui %25 : i1 to i32
    %c0_i32_8 = arith.constant 0 : i32
    %27 = arith.cmpi ne, %26, %c0_i32_8 : i32
    scf.if %27 {
      %c0_11 = arith.constant 0 : index
      %c0_12 = arith.constant 0 : index
      %31 = vector.load %arg8[%c0_11, %c0_12] : memref<8x257xf32, #tpu.memory_space<vmem>>, vector<8x257xf32>
      %32 = vector.extract_strided_slice %31 {offsets = [0, 256], sizes = [8, 1], strides = [1, 1]} : vector<8x257xf32> to vector<8x1xf32>
      %cst = arith.constant 1.000000e+00 : f32
      %33 = vector.broadcast %cst : f32 to vector<8x1xf32>
      %34 = arith.maximumf %32, %33 : vector<8x1xf32>
      %cst_13 = arith.constant 1.000000e+00 : f32
      %35 = vector.broadcast %cst_13 : f32 to vector<8x1xf32>
      %36 = arith.divf %35, %34 : vector<8x1xf32>
      %37 = vector.extract_strided_slice %31 {offsets = [0, 0], sizes = [8, 128], strides = [1, 1]} : vector<8x257xf32> to vector<8x128xf32>
      %38 = vector.broadcast %36 : vector<8x1xf32> to vector<8x128xf32>
      %39 = arith.mulf %37, %38 : vector<8x128xf32>
      %40 = vector.extract_strided_slice %31 {offsets = [0, 128], sizes = [8, 128], strides = [1, 1]} : vector<8x257xf32> to vector<8x128xf32>
      %41 = vector.broadcast %36 : vector<8x1xf32> to vector<8x128xf32>
      %42 = arith.mulf %40, %41 : vector<8x128xf32>
      %c0_14 = arith.constant 0 : index
      %c0_15 = arith.constant 0 : index
      %43 = vector.load %arg4[%c0_14, %c0_15] : memref<1x128xf32, #tpu.memory_space<vmem>>, vector<1x128xf32>
      %cst_16 = arith.constant 2.000000e+00 : f32
      %44 = vector.broadcast %cst_16 : f32 to vector<1x128xf32>
      %45 = arith.mulf %44, %43 : vector<1x128xf32>
      %46 = arith.mulf %43, %43 : vector<1x128xf32>
      %47 = arith.subf %45, %46 : vector<1x128xf32>
      %48 = arith.mulf %39, %39 : vector<8x128xf32>
      %49 = vector.broadcast %47 : vector<1x128xf32> to vector<8x128xf32>
      %50 = arith.mulf %49, %48 : vector<8x128xf32>
      %51 = arith.subf %42, %50 : vector<8x128xf32>
      %cst_17 = arith.constant 9.99999971E-10 : f32
      %52 = vector.broadcast %cst_17 : f32 to vector<8x128xf32>
      %53 = arith.addf %51, %52 : vector<8x128xf32>
      %54 = math.rsqrt %53 : vector<8x128xf32>
      %55 = tpu.concatenate %39, %54 in 1 : vector<8x128xf32>, vector<8x128xf32> -> vector<8x256xf32>
      %c0_18 = arith.constant 0 : index
      %c0_19 = arith.constant 0 : index
      %56 = vector.load %arg9[%c0_18, %c0_19] : memref<8x256xf32, #tpu.memory_space<vmem>>, vector<8x256xf32>
      tpu.vector_store %arg9[%c0_18, %c0_19], %55 {strides = array<i32>} : memref<8x256xf32, #tpu.memory_space<vmem>>, vector<8x256xf32>,
    } else {
    }
    %c1_i32_9 = arith.constant 1 : i32
    %28 = arith.cmpi eq, %arg0, %c1_i32_9 : i32
    %29 = arith.extui %28 : i1 to i32
    %c0_i32_10 = arith.constant 0 : i32
    %30 = arith.cmpi ne, %29, %c0_i32_10 : i32
    scf.if %30 {
      %c0_11 = arith.constant 0 : index
      %c0_12 = arith.constant 0 : index
      %31 = vector.load %arg9[%c0_11, %c0_12] : memref<8x256xf32, #tpu.memory_space<vmem>>, vector<8x256xf32>
      %cst = arith.constant dense<0.000000e+00> : vector<256x256xf32>
      %32 = tpu.matmul %14, %31, %cst {dimension_numbers = #tpu.dot_dimension_numbers<[1], [0], [0], [1], [0, 0, 1, 1], [], []>} : vector<256x8xf32>, vector<8x256xf32>, vector<256x256xf32> -> vector<256x256xf32>
      %33 = vector.extract_strided_slice %32 {offsets = [0, 0], sizes = [256, 128], strides = [1, 1]} : vector<256x256xf32> to vector<256x128xf32>
      %34 = vector.extract_strided_slice %32 {offsets = [0, 128], sizes = [256, 128], strides = [1, 1]} : vector<256x256xf32> to vector<256x128xf32>
      %c0_13 = arith.constant 0 : index
      %c0_14 = arith.constant 0 : index
      %35 = vector.load %arg4[%c0_13, %c0_14] : memref<1x128xf32, #tpu.memory_space<vmem>>, vector<1x128xf32>
      %36 = vector.broadcast %35 : vector<1x128xf32> to vector<256x128xf32>
      %37 = arith.mulf %36, %33 : vector<256x128xf32>
      %38 = arith.subf %0, %37 : vector<256x128xf32>
      %c0_15 = arith.constant 0 : index
      %c0_16 = arith.constant 0 : index
      %39 = vector.load %arg5[%c0_15, %c0_16] : memref<1x128xf32, #tpu.memory_space<vmem>>, vector<1x128xf32>
      %40 = vector.broadcast %39 : vector<1x128xf32> to vector<256x128xf32>
      %41 = arith.mulf %40, %38 : vector<256x128xf32>
      %42 = arith.mulf %41, %34 : vector<256x128xf32>
      %c0_17 = arith.constant 0 : index
      %c0_18 = arith.constant 0 : index
      %43 = vector.load %arg6[%c0_17, %c0_18] : memref<1x128xf32, #tpu.memory_space<vmem>>, vector<1x128xf32>
      %44 = vector.broadcast %43 : vector<1x128xf32> to vector<256x128xf32>
      %45 = arith.addf %42, %44 : vector<256x128xf32>
      %c0_19 = arith.constant 0 : index
      %c0_20 = arith.constant 0 : index
      %46 = vector.load %arg7[%c0_19, %c0_20] : memref<256x128xf32, #tpu.memory_space<vmem>>, vector<256x128xf32>
      tpu.vector_store %arg7[%c0_19, %c0_20], %45 {strides = array<i32>} : memref<256x128xf32, #tpu.memory_space<vmem>>, vector<256x128xf32>,
    } else {
    }
    return
  }
  func.func @transform_0(%arg0: i32, %arg1: i32) -> (i32, i32) {
    %c0_i32 = arith.constant 0 : i32
    %c0_i32_0 = arith.constant 0 : i32
    return %arg1, %c0_i32 : i32, i32
  }
  func.func @transform_1(%arg0: i32, %arg1: i32) -> (i32, i32) {
    %c0_i32 = arith.constant 0 : i32
    %c0_i32_0 = arith.constant 0 : i32
    return %arg1, %c0_i32 : i32, i32
  }
  func.func @transform_2(%arg0: i32, %arg1: i32) -> (i32, i32) {
    %c0_i32 = arith.constant 0 : i32
    %c0_i32_0 = arith.constant 0 : i32
    %c0_i32_1 = arith.constant 0 : i32
    return %c0_i32, %c0_i32_0 : i32, i32
  }
  func.func @transform_3(%arg0: i32, %arg1: i32) -> (i32, i32) {
    %c0_i32 = arith.constant 0 : i32
    %c0_i32_0 = arith.constant 0 : i32
    %c0_i32_1 = arith.constant 0 : i32
    return %c0_i32, %c0_i32_0 : i32, i32
  }
  func.func @transform_4(%arg0: i32, %arg1: i32) -> (i32, i32) {
    %c0_i32 = arith.constant 0 : i32
    %c0_i32_0 = arith.constant 0 : i32
    %c0_i32_1 = arith.constant 0 : i32
    return %c0_i32, %c0_i32_0 : i32, i32
  }
  func.func @transform_5(%arg0: i32, %arg1: i32) -> (i32, i32) {
    %0 = arith.muli %arg1, %arg0 : i32
    %c0_i32 = arith.constant 0 : i32
    %c0_i32_0 = arith.constant 0 : i32
    return %0, %c0_i32 : i32, i32
  }
}

</mosaic_0001>

<llo_original>
// kernel: tpu_custom_call.1
$region0: #{tpu_custom_call.1}
  #allocation0 [shape = 'u32[]', space=smem, size = 0x4, offset = 0x4, fixed_abs, tag = 'smem constant byte address 0x4 - core index']
  #allocation1 [shape = 'u32[72,128]{1,0:T(1,128)}', space=vmem, size = 0x9000, scoped, tag = 'internal scratch']
  #allocation2 [shape = 'f32[8,257]{1,0:T(8,128)}', space=vmem, size = 0x3000, scoped, tag = 'scratch operand']
  #allocation3 [shape = 'f32[8,256]{1,0:T(8,128)}', space=vmem, size = 0x2000, scoped, tag = 'scratch operand']
  %s0 = inlined_call_operand.vmem [shape: f32[1024,128], index: 0, kind: input, shape index: {}]
  %s1 = inlined_call_operand.vmem [shape: s32[1024,1], index: 1, kind: input, shape index: {}]
  %s2 = inlined_call_operand.vmem [shape: f32[1,128], index: 2, kind: input, shape index: {}]
  %s3 = inlined_call_operand.vmem [shape: f32[1,128], index: 3, kind: input, shape index: {}]
  %s4 = inlined_call_operand.vmem [shape: f32[1,128], index: 4, kind: input, shape index: {}]
  %s5 = inlined_call_operand.hbm [shape: f32[1024,128], index: 5, kind: output, shape index: {}]
  %s6 = sld [smem:[#allocation0]]
  $region69: #{tpu_custom_call.1} parent=0
    _
  %s8 = ssub.s32 1, %s6
  %s9 = scalar_select 0, %s8, %s6
  $region1: #{tpu_custom_call.1} parent=0
    #allocation4 [shape = 'u8[262144]{0}', space=vmem, size = 0x40000, scoped, tag = 'output window, operand 0']
    #allocation5 [shape = 's32[2]{0}', space=sflag, size = 0x8, scoped, tag = 'scoped memory for tpu_custom_call.1']
    %10 = vsyncpa [#allocation5], 0
    %s11 = scalar_lea.sflag [#allocation5], 1
    %12 = vsyncpa %s11, 0
    loop: start=0, step=1, limit=10
    $region2: #{tpu_custom_call.1} parent=1 // loop_pre_header
      _
    $region3: #{tpu_custom_call.1} parent=1 // loop_header
      %s14 = sphi 0, %s18
      %p15 = scmp.ge.s32.totalorder %s14, 10
      %s21 = sphi 0, %s33
      %s22 = sphi 0, %s29
      %s23 = sphi 0, %s21
      %s24 = sphi 0, %s22
      %s25 = sphi 0, %s23
      %s26 = sphi 0, %s24
      %s36 = sphi 0, %s38
      %s39 = sphi 0, %s36
      %s40 = sphi 0, %s39
      %s56 = sphi 0, %s40
      %s62 = sphi 0, %s64
      %s65 = sphi 0, %s62
      %s66 = sphi 0, %s65
      %s82 = sphi 0, %s66
      %s86 = sphi 0, %s86
      %s88 = sphi 0, %s86
      %s89 = sphi 0, %s88
      %s103 = sphi 0, %s89
      %s107 = sphi 0, %s107
      %s109 = sphi 0, %s107
      %s110 = sphi 0, %s109
      %s124 = sphi 0, %s110
      %s128 = sphi 0, %s128
      %s130 = sphi 0, %s128
      %s131 = sphi 0, %s130
      %s145 = sphi 0, %s131
      %s153 = sphi 0, %s155
      %s156 = sphi 0, %s153
      %s157 = sphi 0, %s156
      %s173 = sphi 0, %s157
    $region4: #{tpu_custom_call.1} parent=1 // loop_header_branch
      %17 = sbr.rel (%p15) target = $region8
    $region5: #{tpu_custom_call.1} parent=1 // loop_body
      %s19 = ssub.s32 %s14, 1
      %s20 = ssub.s32 %s14, 2
      %s27 = sadd.s32 1, %s22
      %p28 = scmp.ge.s32.totalorder %s27, 4
      %s29 = scalar_select %p28, 0, %s27
      %s30 = sadd.s32 1, %s21
      %s31 = scalar_select %p28, %s30, %s21
      %p32 = scmp.ge.s32.totalorder %s31, 2
      %s33 = scalar_select %p32, 0, %s31
      %s34 = ssub.s32 %s22, %s29
      %p35 = scmp.eq.s32.totalorder %s34, 0
      %s37 = sadd.s32 %s36, 1
      %s38 = scalar_select %p35, %s36, %s37
      %p41 = pneg %p35
      %p42 = scmp.eq.s32.totalorder %s14, 7
      %p43 = por %p41, %p42
      %p44 = scmp.ne.s32.totalorder %s36, %s39
      %p45 = scmp.eq.s32.totalorder %s14, 0
      %p46 = por %p44, %p45
      %p47 = scmp.ne.s32.totalorder %s36, %s39
      %p48 = scmp.eq.s32.totalorder %s19, 7
      %p49 = por %p47, %p48
      %p50 = scmp.ne.s32.totalorder %s39, %s40
      %p51 = scmp.eq.s32.totalorder %s19, 0
      %p52 = por %p50, %p51
      %p53 = scmp.ne.s32.totalorder %s39, %s40
      %p54 = scmp.eq.s32.totalorder %s20, 7
      %p55 = por %p53, %p54
      %p57 = scmp.ne.s32.totalorder %s40, %s56
      %p58 = scmp.eq.s32.totalorder %s20, 0
      %p59 = por %p57, %p58
      %s60 = ssub.s32 %s22, %s29
      %p61 = scmp.eq.s32.totalorder %s60, 0
      %s63 = sadd.s32 %s62, 1
      %s64 = scalar_select %p61, %s62, %s63
      %p67 = pneg %p61
      %p68 = scmp.eq.s32.totalorder %s14, 7
      %p69 = por %p67, %p68
      %p70 = scmp.ne.s32.totalorder %s62, %s65
      %p71 = scmp.eq.s32.totalorder %s14, 0
      %p72 = por %p70, %p71
      %p73 = scmp.ne.s32.totalorder %s62, %s65
      %p74 = scmp.eq.s32.totalorder %s19, 7
      %p75 = por %p73, %p74
      %p76 = scmp.ne.s32.totalorder %s65, %s66
      %p77 = scmp.eq.s32.totalorder %s19, 0
      %p78 = por %p76, %p77
      %p79 = scmp.ne.s32.totalorder %s65, %s66
      %p80 = scmp.eq.s32.totalorder %s20, 7
      %p81 = por %p79, %p80
      %p83 = scmp.ne.s32.totalorder %s66, %s82
      %p84 = scmp.eq.s32.totalorder %s20, 0
      %p85 = por %p83, %p84
      %s87 = sadd.s32 %s86, 1
      %p90 = scmp.eq.s32.totalorder %s14, 7
      %p91 = scmp.ne.s32.totalorder %s86, %s88
      %p92 = scmp.eq.s32.totalorder %s14, 0
      %p93 = por %p91, %p92
      %p94 = scmp.ne.s32.totalorder %s86, %s88
      %p95 = scmp.eq.s32.totalorder %s19, 7
      %p96 = por %p94, %p95
      %p97 = scmp.ne.s32.totalorder %s88, %s89
      %p98 = scmp.eq.s32.totalorder %s19, 0
      %p99 = por %p97, %p98
      %p100 = scmp.ne.s32.totalorder %s88, %s89
      %p101 = scmp.eq.s32.totalorder %s20, 7
      %p102 = por %p100, %p101
      %p104 = scmp.ne.s32.totalorder %s89, %s103
      %p105 = scmp.eq.s32.totalorder %s20, 0
      %p106 = por %p104, %p105
      %s108 = sadd.s32 %s107, 1
      %p111 = scmp.eq.s32.totalorder %s14, 7
      %p112 = scmp.ne.s32.totalorder %s107, %s109
      %p113 = scmp.eq.s32.totalorder %s14, 0
      %p114 = por %p112, %p113
      %p115 = scmp.ne.s32.totalorder %s107, %s109
      %p116 = scmp.eq.s32.totalorder %s19, 7
      %p117 = por %p115, %p116
      %p118 = scmp.ne.s32.totalorder %s109, %s110
      %p119 = scmp.eq.s32.totalorder %s19, 0
      %p120 = por %p118, %p119
      %p121 = scmp.ne.s32.totalorder %s109, %s110
      %p122 = scmp.eq.s32.totalorder %s20, 7
      %p123 = por %p121, %p122
      %p125 = scmp.ne.s32.totalorder %s110, %s124
      %p126 = scmp.eq.s32.totalorder %s20, 0
      %p127 = por %p125, %p126
      %s129 = sadd.s32 %s128, 1
      %p132 = scmp.eq.s32.totalorder %s14, 7
      %p133 = scmp.ne.s32.totalorder %s128, %s130
      %p134 = scmp.eq.s32.totalorder %s14, 0
      %p135 = por %p133, %p134
      %p136 = scmp.ne.s32.totalorder %s128, %s130
      %p137 = scmp.eq.s32.totalorder %s19, 7
      %p138 = por %p136, %p137
      %p139 = scmp.ne.s32.totalorder %s130, %s131
      %p140 = scmp.eq.s32.totalorder %s19, 0
      %p141 = por %p139, %p140
      %p142 = scmp.ne.s32.totalorder %s130, %s131
      %p143 = scmp.eq.s32.totalorder %s20, 7
      %p144 = por %p142, %p143
      %p146 = scmp.ne.s32.totalorder %s131, %s145
      %p147 = scmp.eq.s32.totalorder %s20, 0
      %p148 = por %p146, %p147
      %s149 = smul.u32 %s22, %s21
      %s150 = smul.u32 %s29, %s33
      %s151 = ssub.s32 %s149, %s150
      %p152 = scmp.eq.s32.totalorder %s151, 0
      %s154 = sadd.s32 %s153, 1
      %s155 = scalar_select %p152, %s153, %s154
      %p158 = pneg %p152
      %p159 = scmp.eq.s32.totalorder %s14, 7
      %p160 = por %p158, %p159
      %p161 = scmp.ne.s32.totalorder %s153, %s156
      %p162 = scmp.eq.s32.totalorder %s14, 0
      %p163 = por %p161, %p162
      %p164 = scmp.ne.s32.totalorder %s153, %s156
      %p165 = scmp.eq.s32.totalorder %s19, 7
      %p166 = por %p164, %p165
      %p167 = scmp.ne.s32.totalorder %s156, %s157
      %p168 = scmp.eq.s32.totalorder %s19, 0
      %p169 = por %p167, %p168
      %p170 = scmp.ne.s32.totalorder %s156, %s157
      %p171 = scmp.eq.s32.totalorder %s20, 7
      %p172 = por %p170, %p171
      %p174 = scmp.ne.s32.totalorder %s157, %s173
      %p175 = scmp.eq.s32.totalorder %s20, 0
      %p176 = por %p174, %p175
      %p177 = scmp.le.s32.totalorder 1, %s14
      %p178 = scmp.lt.s32.totalorder %s14, 9
      %p179 = pnand %p177, %p178
      %p180 = pneg %p179
      // Predicated region
      $region9: #{tpu_custom_call.1} parent=5 // pred_check
        _
      $region10: #{tpu_custom_call.1} parent=5 // pred_check_branch
        %182 = sbr.rel (%p179) target = $region12
      $region11: #{tpu_custom_call.1} parent=5 // pred_region
        %s183 = ssub.s32 %s14, 1
        // Predicated region
        $region13: #{tpu_custom_call.1} parent=11 // pred_check
          %p184 = pneg %p99
        $region14: #{tpu_custom_call.1} parent=11 // pred_check_branch
          %186 = sbr.rel (%p184) target = $region16
        $region15: #{tpu_custom_call.1} parent=11 // pred_region
          _
        $region16: #{tpu_custom_call.1} parent=11 // pred_fallthru
          _
        // Predicated region
        $region17: #{tpu_custom_call.1} parent=11 // pred_check
          %p187 = pneg %p120
        $region18: #{tpu_custom_call.1} parent=11 // pred_check_branch
          %189 = sbr.rel (%p187) target = $region20
        $region19: #{tpu_custom_call.1} parent=11 // pred_region
          _
        $region20: #{tpu_custom_call.1} parent=11 // pred_fallthru
          _
        // Predicated region
        $region21: #{tpu_custom_call.1} parent=11 // pred_check
          %p190 = pneg %p141
        $region22: #{tpu_custom_call.1} parent=11 // pred_check_branch
          %192 = sbr.rel (%p190) target = $region24
        $region23: #{tpu_custom_call.1} parent=11 // pred_region
          _
        $region24: #{tpu_custom_call.1} parent=11 // pred_fallthru
          _
      $region12: #{tpu_custom_call.1} parent=5 // pred_fallthru
        _
      %p193 = scmp.lt.s32.totalorder %s14, 8
      // Predicated region
      $region25: #{tpu_custom_call.1} parent=5 // pred_check
        %p194 = pneg %p193
      $region26: #{tpu_custom_call.1} parent=5 // pred_check_branch
        %196 = sbr.rel (%p194) target = $region28
      $region27: #{tpu_custom_call.1} parent=5 // pred_region
        // Predicated region
        $region29: #{tpu_custom_call.1} parent=27 // pred_check
          %p197 = pneg %p46
        $region30: #{tpu_custom_call.1} parent=27 // pred_check_branch
          %199 = sbr.rel (%p197) target = $region32
        $region31: #{tpu_custom_call.1} parent=27 // pred_region
          %s200 = smul.u32 32, %s22
          %p201 = scmp.lt.s32.totalorder %s200, 127
          %s202 = scalar_select %p201, %s200, 127
          %s203 = smul.addr %s202, 8
          %s204 = scalar_lea.vmem %s0, %s203
          %s205 = smul.u32 32, %s22
        $region32: #{tpu_custom_call.1} parent=27 // pred_fallthru
          _
        // Predicated region
        $region33: #{tpu_custom_call.1} parent=27 // pred_check
          %p206 = pneg %p72
        $region34: #{tpu_custom_call.1} parent=27 // pred_check_branch
          %208 = sbr.rel (%p206) target = $region36
        $region35: #{tpu_custom_call.1} parent=27 // pred_region
          %s209 = smul.u32 32, %s22
          %p210 = scmp.lt.s32.totalorder %s209, 127
          %s211 = scalar_select %p210, %s209, 127
          %s212 = smul.addr %s211, 8
          %s213 = scalar_lea.vmem %s1, %s212
          %s214 = smul.u32 32, %s22
        $region36: #{tpu_custom_call.1} parent=27 // pred_fallthru
          _
      $region28: #{tpu_custom_call.1} parent=5 // pred_fallthru
        _
      %p215 = scmp.le.s32.totalorder 1, %s14
      %p216 = scmp.lt.s32.totalorder %s14, 9
      %p217 = pnand %p215, %p216
      %p218 = pneg %p217
      // Predicated region
      $region37: #{tpu_custom_call.1} parent=5 // pred_check
        _
      $region38: #{tpu_custom_call.1} parent=5 // pred_check_branch
        %220 = sbr.rel (%p217) target = $region40
      $region39: #{tpu_custom_call.1} parent=5 // pred_region
        %s221 = ssub.s32 %s14, 1
        %s222 = smul.u32 32, %s24
        %p223 = scmp.lt.s32.totalorder %s222, 127
        %s224 = scalar_select %p223, %s222, 127
        %s225 = smul.addr %s224, 8
        %s226 = scalar_lea.vmem %s0, %s225
        %p227 = pneg %p52
        %p228 = pneg %p49
        %s229 = smul.u32 32, %s24
        %p230 = scmp.lt.s32.totalorder %s229, 127
        %s231 = scalar_select %p230, %s229, 127
        %s232 = smul.addr %s231, 8
        %s233 = scalar_lea.vmem %s1, %s232
        %p234 = pneg %p78
        %p235 = pneg %p75
        %p236 = pneg %p99
        %p237 = pneg %p96
        %p238 = pneg %p120
        %p239 = pneg %p117
        %p240 = pneg %p141
        %p241 = pneg %p138
        %p242 = pneg %p169
        %p243 = pneg %p166
        %s244 = sand.u32 %s156, 1
        %s245 = scalar_lea.sflag [#allocation5], %s244
        %s246 = sand.u32 %s156, 1
        %s247 = smul.addr %s246, 256
        %s248 = scalar_lea.vmem [#allocation4], %s247
        %s249 = smul.u32 32, %s24
        %p250 = scmp.lt.s32.totalorder %s249, 127
        %s251 = scalar_select %p250, %s249, 127
        %s252 = smul.addr %s251, 8
        %s253 = scalar_lea.vmem %s0, %s252
        %s254 = smul.u32 32, %s24
        %s255 = smul.u32 32, %s24
        %p256 = scmp.lt.s32.totalorder %s255, 127
        %s257 = scalar_select %p256, %s255, 127
        %s258 = smul.addr %s257, 8
        %s259 = scalar_lea.vmem %s1, %s258
        %s260 = smul.u32 32, %s24
        %s261 = smul.u32 %s24, %s23
        %s262 = smul.u32 32, %s261
        %v263 = vld [vmem:[%s253] sm:$0xff]
        %v264 = vld [vmem:[%s253 + $0x8] sm:$0xff]
        %v265 = vld [vmem:[%s253 + $0x10] sm:$0xff]
        %v266 = vld [vmem:[%s253 + $0x18] sm:$0xff]
        %v267 = vld [vmem:[%s253 + $0x20] sm:$0xff]
        %v268 = vld [vmem:[%s253 + $0x28] sm:$0xff]
        %v269 = vld [vmem:[%s253 + $0x30] sm:$0xff]
        %v270 = vld [vmem:[%s253 + $0x38] sm:$0xff]
        %v271 = vld [vmem:[%s253 + $0x40] sm:$0xff]
        %v272 = vld [vmem:[%s253 + $0x48] sm:$0xff]
        %v273 = vld [vmem:[%s253 + $0x50] sm:$0xff]
        %v274 = vld [vmem:[%s253 + $0x58] sm:$0xff]
        %v275 = vld [vmem:[%s253 + $0x60] sm:$0xff]
        %v276 = vld [vmem:[%s253 + $0x68] sm:$0xff]
        %v277 = vld [vmem:[%s253 + $0x70] sm:$0xff]
        %v278 = vld [vmem:[%s253 + $0x78] sm:$0xff]
        %v279 = vld [vmem:[%s253 + $0x80] sm:$0xff]
        %v280 = vld [vmem:[%s253 + $0x88] sm:$0xff]
        %v281 = vld [vmem:[%s253 + $0x90] sm:$0xff]
        %v282 = vld [vmem:[%s253 + $0x98] sm:$0xff]
        %v283 = vld [vmem:[%s253 + $0xa0] sm:$0xff]
        %v284 = vld [vmem:[%s253 + $0xa8] sm:$0xff]
        %v285 = vld [vmem:[%s253 + $0xb0] sm:$0xff]
        %v286 = vld [vmem:[%s253 + $0xb8] sm:$0xff]
        %v287 = vld [vmem:[%s253 + $0xc0] sm:$0xff]
        %v288 = vld [vmem:[%s253 + $0xc8] sm:$0xff]
        %v289 = vld [vmem:[%s253 + $0xd0] sm:$0xff]
        %v290 = vld [vmem:[%s253 + $0xd8] sm:$0xff]
        %v291 = vld [vmem:[%s253 + $0xe0] sm:$0xff]
        %v292 = vld [vmem:[%s253 + $0xe8] sm:$0xff]
        %v293 = vld [vmem:[%s253 + $0xf0] sm:$0xff]
        %v294 = vld [vmem:[%s253 + $0xf8] sm:$0xff]
        %v295 = vld [vmem:[%s259] sm:$0xff]
        %v296 = vld [vmem:[%s259 + $0x8] sm:$0xff]
        %v297 = vld [vmem:[%s259 + $0x10] sm:$0xff]
        %v298 = vld [vmem:[%s259 + $0x18] sm:$0xff]
        %v299 = vld [vmem:[%s259 + $0x20] sm:$0xff]
        %v300 = vld [vmem:[%s259 + $0x28] sm:$0xff]
        %v301 = vld [vmem:[%s259 + $0x30] sm:$0xff]
        %v302 = vld [vmem:[%s259 + $0x38] sm:$0xff]
        %v303 = vld [vmem:[%s259 + $0x40] sm:$0xff]
        %v304 = vld [vmem:[%s259 + $0x48] sm:$0xff]
        %v305 = vld [vmem:[%s259 + $0x50] sm:$0xff]
        %v306 = vld [vmem:[%s259 + $0x58] sm:$0xff]
        %v307 = vld [vmem:[%s259 + $0x60] sm:$0xff]
        %v308 = vld [vmem:[%s259 + $0x68] sm:$0xff]
        %v309 = vld [vmem:[%s259 + $0x70] sm:$0xff]
        %v310 = vld [vmem:[%s259 + $0x78] sm:$0xff]
        %v311 = vld [vmem:[%s259 + $0x80] sm:$0xff]
        %v312 = vld [vmem:[%s259 + $0x88] sm:$0xff]
        %v313 = vld [vmem:[%s259 + $0x90] sm:$0xff]
        %v314 = vld [vmem:[%s259 + $0x98] sm:$0xff]
        %v315 = vld [vmem:[%s259 + $0xa0] sm:$0xff]
        %v316 = vld [vmem:[%s259 + $0xa8] sm:$0xff]
        %v317 = vld [vmem:[%s259 + $0xb0] sm:$0xff]
        %v318 = vld [vmem:[%s259 + $0xb8] sm:$0xff]
        %v319 = vld [vmem:[%s259 + $0xc0] sm:$0xff]
        %v320 = vld [vmem:[%s259 + $0xc8] sm:$0xff]
        %v321 = vld [vmem:[%s259 + $0xd0] sm:$0xff]
        %v322 = vld [vmem:[%s259 + $0xd8] sm:$0xff]
        %v323 = vld [vmem:[%s259 + $0xe0] sm:$0xff]
        %v324 = vld [vmem:[%s259 + $0xe8] sm:$0xff]
        %v325 = vld [vmem:[%s259 + $0xf0] sm:$0xff]
        %v326 = vld [vmem:[%s259 + $0xf8] sm:$0xff]
        %s327 = smul.u32 %s24, 256
        %v328 = vlaneseq
        %v329 = vshrl.u32 %v328, 7
        %v330 = vadd.s32 %v329, 8
        %v331 = vadd.s32 %v329, 16
        %v332 = vadd.s32 %v329, 24
        %v333 = vadd.s32 %v329, 32
        %v334 = vadd.s32 %v329, 40
        %v335 = vadd.s32 %v329, 48
        %v336 = vadd.s32 %v329, 56
        %v337 = vadd.s32 %v329, 64
        %v338 = vadd.s32 %v329, 72
        %v339 = vadd.s32 %v329, 80
        %v340 = vadd.s32 %v329, 88
        %v341 = vadd.s32 %v329, 96
        %v342 = vadd.s32 %v329, 104
        %v343 = vadd.s32 %v329, 112
        %v344 = vadd.s32 %v329, 120
        %v345 = vadd.s32 %v329, 128
        %v346 = vadd.s32 %v329, 136
        %v347 = vadd.s32 %v329, 144
        %v348 = vadd.s32 %v329, 152
        %v349 = vadd.s32 %v329, 160
        %v350 = vadd.s32 %v329, 168
        %v351 = vadd.s32 %v329, 176
        %v352 = vadd.s32 %v329, 184
        %v353 = vadd.s32 %v329, 192
        %v354 = vadd.s32 %v329, 200
        %v355 = vadd.s32 %v329, 208
        %v356 = vadd.s32 %v329, 216
        %v357 = vadd.s32 %v329, 224
        %v358 = vadd.s32 %v329, 232
        %v359 = vadd.s32 %v329, 240
        %v360 = vadd.s32 %v329, 248
        %v361 = vstv %s327
        %v362 = vadd.s32 %v361, %v329
        %v363 = vadd.s32 %v361, %v330
        %v364 = vadd.s32 %v361, %v331
        %v365 = vadd.s32 %v361, %v332
        %v366 = vadd.s32 %v361, %v333
        %v367 = vadd.s32 %v361, %v334
        %v368 = vadd.s32 %v361, %v335
        %v369 = vadd.s32 %v361, %v336
        %v370 = vadd.s32 %v361, %v337
        %v371 = vadd.s32 %v361, %v338
        %v372 = vadd.s32 %v361, %v339
        %v373 = vadd.s32 %v361, %v340
        %v374 = vadd.s32 %v361, %v341
        %v375 = vadd.s32 %v361, %v342
        %v376 = vadd.s32 %v361, %v343
        %v377 = vadd.s32 %v361, %v344
        %v378 = vadd.s32 %v361, %v345
        %v379 = vadd.s32 %v361, %v346
        %v380 = vadd.s32 %v361, %v347
        %v381 = vadd.s32 %v361, %v348
        %v382 = vadd.s32 %v361, %v349
        %v383 = vadd.s32 %v361, %v350
        %v384 = vadd.s32 %v361, %v351
        %v385 = vadd.s32 %v361, %v352
        %v386 = vadd.s32 %v361, %v353
        %v387 = vadd.s32 %v361, %v354
        %v388 = vadd.s32 %v361, %v355
        %v389 = vadd.s32 %v361, %v356
        %v390 = vadd.s32 %v361, %v357
        %v391 = vadd.s32 %v361, %v358
        %v392 = vadd.s32 %v361, %v359
        %v393 = vadd.s32 %v361, %v360
        %vm394 = vcmp.lt.s32.totalorder %v362, 1024
        %vm395 = vcmp.lt.s32.totalorder %v363, 1024
        %vm396 = vcmp.lt.s32.totalorder %v364, 1024
        %vm397 = vcmp.lt.s32.totalorder %v365, 1024
        %vm398 = vcmp.lt.s32.totalorder %v366, 1024
        %vm399 = vcmp.lt.s32.totalorder %v367, 1024
        %vm400 = vcmp.lt.s32.totalorder %v368, 1024
        %vm401 = vcmp.lt.s32.totalorder %v369, 1024
        %vm402 = vcmp.lt.s32.totalorder %v370, 1024
        %vm403 = vcmp.lt.s32.totalorder %v371, 1024
        %vm404 = vcmp.lt.s32.totalorder %v372, 1024
        %vm405 = vcmp.lt.s32.totalorder %v373, 1024
        %vm406 = vcmp.lt.s32.totalorder %v374, 1024
        %vm407 = vcmp.lt.s32.totalorder %v375, 1024
        %vm408 = vcmp.lt.s32.totalorder %v376, 1024
        %vm409 = vcmp.lt.s32.totalorder %v377, 1024
        %vm410 = vcmp.lt.s32.totalorder %v378, 1024
        %vm411 = vcmp.lt.s32.totalorder %v379, 1024
        %vm412 = vcmp.lt.s32.totalorder %v380, 1024
        %vm413 = vcmp.lt.s32.totalorder %v381, 1024
        %vm414 = vcmp.lt.s32.totalorder %v382, 1024
        %vm415 = vcmp.lt.s32.totalorder %v383, 1024
        %vm416 = vcmp.lt.s32.totalorder %v384, 1024
        %vm417 = vcmp.lt.s32.totalorder %v385, 1024
        %vm418 = vcmp.lt.s32.totalorder %v386, 1024
        %vm419 = vcmp.lt.s32.totalorder %v387, 1024
        %vm420 = vcmp.lt.s32.totalorder %v388, 1024
        %vm421 = vcmp.lt.s32.totalorder %v389, 1024
        %vm422 = vcmp.lt.s32.totalorder %v390, 1024
        %vm423 = vcmp.lt.s32.totalorder %v391, 1024
        %vm424 = vcmp.lt.s32.totalorder %v392, 1024
        %vm425 = vcmp.lt.s32.totalorder %v393, 1024
        %v426 = vlaneseq
        %v427 = vand.u32 %v426, 127
        %428 = vset.pattern.permute.xlu0 0
        %429 = vperm.xlu0 %428, %v295
        %v430 = vpop.permute.xlu0 %429
        %431 = vset.pattern.permute.xlu0 0
        %432 = vperm.xlu0 %431, %v296
        %v433 = vpop.permute.xlu0 %432
        %434 = vset.pattern.permute.xlu0 0
        %435 = vperm.xlu0 %434, %v297
        %v436 = vpop.permute.xlu0 %435
        %437 = vset.pattern.permute.xlu0 0
        %438 = vperm.xlu0 %437, %v298
        %v439 = vpop.permute.xlu0 %438
        %440 = vset.pattern.permute.xlu0 0
        %441 = vperm.xlu0 %440, %v299
        %v442 = vpop.permute.xlu0 %441
        %443 = vset.pattern.permute.xlu0 0
        %444 = vperm.xlu0 %443, %v300
        %v445 = vpop.permute.xlu0 %444
        %446 = vset.pattern.permute.xlu0 0
        %447 = vperm.xlu0 %446, %v301
        %v448 = vpop.permute.xlu0 %447
        %449 = vset.pattern.permute.xlu0 0
        %450 = vperm.xlu0 %449, %v302
        %v451 = vpop.permute.xlu0 %450
        %452 = vset.pattern.permute.xlu0 0
        %453 = vperm.xlu0 %452, %v303
        %v454 = vpop.permute.xlu0 %453
        %455 = vset.pattern.permute.xlu0 0
        %456 = vperm.xlu0 %455, %v304
        %v457 = vpop.permute.xlu0 %456
        %458 = vset.pattern.permute.xlu0 0
        %459 = vperm.xlu0 %458, %v305
        %v460 = vpop.permute.xlu0 %459
        %461 = vset.pattern.permute.xlu0 0
        %462 = vperm.xlu0 %461, %v306
        %v463 = vpop.permute.xlu0 %462
        %464 = vset.pattern.permute.xlu0 0
        %465 = vperm.xlu0 %464, %v307
        %v466 = vpop.permute.xlu0 %465
        %467 = vset.pattern.permute.xlu0 0
        %468 = vperm.xlu0 %467, %v308
        %v469 = vpop.permute.xlu0 %468
        %470 = vset.pattern.permute.xlu0 0
        %471 = vperm.xlu0 %470, %v309
        %v472 = vpop.permute.xlu0 %471
        %473 = vset.pattern.permute.xlu0 0
        %474 = vperm.xlu0 %473, %v310
        %v475 = vpop.permute.xlu0 %474
        %476 = vset.pattern.permute.xlu0 0
        %477 = vperm.xlu0 %476, %v311
        %v478 = vpop.permute.xlu0 %477
        %479 = vset.pattern.permute.xlu0 0
        %480 = vperm.xlu0 %479, %v312
        %v481 = vpop.permute.xlu0 %480
        %482 = vset.pattern.permute.xlu0 0
        %483 = vperm.xlu0 %482, %v313
        %v484 = vpop.permute.xlu0 %483
        %485 = vset.pattern.permute.xlu0 0
        %486 = vperm.xlu0 %485, %v314
        %v487 = vpop.permute.xlu0 %486
        %488 = vset.pattern.permute.xlu0 0
        %489 = vperm.xlu0 %488, %v315
        %v490 = vpop.permute.xlu0 %489
        %491 = vset.pattern.permute.xlu0 0
        %492 = vperm.xlu0 %491, %v316
        %v493 = vpop.permute.xlu0 %492
        %494 = vset.pattern.permute.xlu0 0
        %495 = vperm.xlu0 %494, %v317
        %v496 = vpop.permute.xlu0 %495
        %497 = vset.pattern.permute.xlu0 0
        %498 = vperm.xlu0 %497, %v318
        %v499 = vpop.permute.xlu0 %498
        %500 = vset.pattern.permute.xlu0 0
        %501 = vperm.xlu0 %500, %v319
        %v502 = vpop.permute.xlu0 %501
        %503 = vset.pattern.permute.xlu0 0
        %504 = vperm.xlu0 %503, %v320
        %v505 = vpop.permute.xlu0 %504
        %506 = vset.pattern.permute.xlu0 0
        %507 = vperm.xlu0 %506, %v321
        %v508 = vpop.permute.xlu0 %507
        %509 = vset.pattern.permute.xlu0 0
        %510 = vperm.xlu0 %509, %v322
        %v511 = vpop.permute.xlu0 %510
        %512 = vset.pattern.permute.xlu0 0
        %513 = vperm.xlu0 %512, %v323
        %v514 = vpop.permute.xlu0 %513
        %515 = vset.pattern.permute.xlu0 0
        %516 = vperm.xlu0 %515, %v324
        %v517 = vpop.permute.xlu0 %516
        %518 = vset.pattern.permute.xlu0 0
        %519 = vperm.xlu0 %518, %v325
        %v520 = vpop.permute.xlu0 %519
        %521 = vset.pattern.permute.xlu0 0
        %522 = vperm.xlu0 %521, %v326
        %v523 = vpop.permute.xlu0 %522
        %vm524 = vcmp.eq.s32.totalorder %v427, %v430
        %vm525 = vcmp.eq.s32.totalorder %v427, %v433
        %vm526 = vcmp.eq.s32.totalorder %v427, %v436
        %vm527 = vcmp.eq.s32.totalorder %v427, %v439
        %vm528 = vcmp.eq.s32.totalorder %v427, %v442
        %vm529 = vcmp.eq.s32.totalorder %v427, %v445
        %vm530 = vcmp.eq.s32.totalorder %v427, %v448
        %vm531 = vcmp.eq.s32.totalorder %v427, %v451
        %vm532 = vcmp.eq.s32.totalorder %v427, %v454
        %vm533 = vcmp.eq.s32.totalorder %v427, %v457
        %vm534 = vcmp.eq.s32.totalorder %v427, %v460
        %vm535 = vcmp.eq.s32.totalorder %v427, %v463
        %vm536 = vcmp.eq.s32.totalorder %v427, %v466
        %vm537 = vcmp.eq.s32.totalorder %v427, %v469
        %vm538 = vcmp.eq.s32.totalorder %v427, %v472
        %vm539 = vcmp.eq.s32.totalorder %v427, %v475
        %vm540 = vcmp.eq.s32.totalorder %v427, %v478
        %vm541 = vcmp.eq.s32.totalorder %v427, %v481
        %vm542 = vcmp.eq.s32.totalorder %v427, %v484
        %vm543 = vcmp.eq.s32.totalorder %v427, %v487
        %vm544 = vcmp.eq.s32.totalorder %v427, %v490
        %vm545 = vcmp.eq.s32.totalorder %v427, %v493
        %vm546 = vcmp.eq.s32.totalorder %v427, %v496
        %vm547 = vcmp.eq.s32.totalorder %v427, %v499
        %vm548 = vcmp.eq.s32.totalorder %v427, %v502
        %vm549 = vcmp.eq.s32.totalorder %v427, %v505
        %vm550 = vcmp.eq.s32.totalorder %v427, %v508
        %vm551 = vcmp.eq.s32.totalorder %v427, %v511
        %vm552 = vcmp.eq.s32.totalorder %v427, %v514
        %vm553 = vcmp.eq.s32.totalorder %v427, %v517
        %vm554 = vcmp.eq.s32.totalorder %v427, %v520
        %vm555 = vcmp.eq.s32.totalorder %v427, %v523
        %v556 = vsel %vm394, 1, 0
        %v557 = vsel %vm395, 1, 0
        %v558 = vsel %vm396, 1, 0
        %v559 = vsel %vm397, 1, 0
        %v560 = vsel %vm398, 1, 0
        %v561 = vsel %vm399, 1, 0
        %v562 = vsel %vm400, 1, 0
        %v563 = vsel %vm401, 1, 0
        %v564 = vsel %vm402, 1, 0
        %v565 = vsel %vm403, 1, 0
        %v566 = vsel %vm404, 1, 0
        %v567 = vsel %vm405, 1, 0
        %v568 = vsel %vm406, 1, 0
        %v569 = vsel %vm407, 1, 0
        %v570 = vsel %vm408, 1, 0
        %v571 = vsel %vm409, 1, 0
        %v572 = vsel %vm410, 1, 0
        %v573 = vsel %vm411, 1, 0
        %v574 = vsel %vm412, 1, 0
        %v575 = vsel %vm413, 1, 0
        %v576 = vsel %vm414, 1, 0
        %v577 = vsel %vm415, 1, 0
        %v578 = vsel %vm416, 1, 0
        %v579 = vsel %vm417, 1, 0
        %v580 = vsel %vm418, 1, 0
        %v581 = vsel %vm419, 1, 0
        %v582 = vsel %vm420, 1, 0
        %v583 = vsel %vm421, 1, 0
        %v584 = vsel %vm422, 1, 0
        %v585 = vsel %vm423, 1, 0
        %v586 = vsel %vm424, 1, 0
        %v587 = vsel %vm425, 1, 0
        %vm588 = vcmp.eq.s32.totalorder %v556, 1
        %vm589 = vcmp.eq.s32.totalorder %v557, 1
        %vm590 = vcmp.eq.s32.totalorder %v558, 1
        %vm591 = vcmp.eq.s32.totalorder %v559, 1
        %vm592 = vcmp.eq.s32.totalorder %v560, 1
        %vm593 = vcmp.eq.s32.totalorder %v561, 1
        %vm594 = vcmp.eq.s32.totalorder %v562, 1
        %vm595 = vcmp.eq.s32.totalorder %v563, 1
        %vm596 = vcmp.eq.s32.totalorder %v564, 1
        %vm597 = vcmp.eq.s32.totalorder %v565, 1
        %vm598 = vcmp.eq.s32.totalorder %v566, 1
        %vm599 = vcmp.eq.s32.totalorder %v567, 1
        %vm600 = vcmp.eq.s32.totalorder %v568, 1
        %vm601 = vcmp.eq.s32.totalorder %v569, 1
        %vm602 = vcmp.eq.s32.totalorder %v570, 1
        %vm603 = vcmp.eq.s32.totalorder %v571, 1
        %vm604 = vcmp.eq.s32.totalorder %v572, 1
        %vm605 = vcmp.eq.s32.totalorder %v573, 1
        %vm606 = vcmp.eq.s32.totalorder %v574, 1
        %vm607 = vcmp.eq.s32.totalorder %v575, 1
        %vm608 = vcmp.eq.s32.totalorder %v576, 1
        %vm609 = vcmp.eq.s32.totalorder %v577, 1
        %vm610 = vcmp.eq.s32.totalorder %v578, 1
        %vm611 = vcmp.eq.s32.totalorder %v579, 1
        %vm612 = vcmp.eq.s32.totalorder %v580, 1
        %vm613 = vcmp.eq.s32.totalorder %v581, 1
        %vm614 = vcmp.eq.s32.totalorder %v582, 1
        %vm615 = vcmp.eq.s32.totalorder %v583, 1
        %vm616 = vcmp.eq.s32.totalorder %v584, 1
        %vm617 = vcmp.eq.s32.totalorder %v585, 1
        %vm618 = vcmp.eq.s32.totalorder %v586, 1
        %vm619 = vcmp.eq.s32.totalorder %v587, 1
        %vm620 = vmand %vm524, %vm588
        %vm621 = vmand %vm525, %vm589
        %vm622 = vmand %vm526, %vm590
        %vm623 = vmand %vm527, %vm591
        %vm624 = vmand %vm528, %vm592
        %vm625 = vmand %vm529, %vm593
        %vm626 = vmand %vm530, %vm594
        %vm627 = vmand %vm531, %vm595
        %vm628 = vmand %vm532, %vm596
        %vm629 = vmand %vm533, %vm597
        %vm630 = vmand %vm534, %vm598
        %vm631 = vmand %vm535, %vm599
        %vm632 = vmand %vm536, %vm600
        %vm633 = vmand %vm537, %vm601
        %vm634 = vmand %vm538, %vm602
        %vm635 = vmand %vm539, %vm603
        %vm636 = vmand %vm540, %vm604
        %vm637 = vmand %vm541, %vm605
        %vm638 = vmand %vm542, %vm606
        %vm639 = vmand %vm543, %vm607
        %vm640 = vmand %vm544, %vm608
        %vm641 = vmand %vm545, %vm609
        %vm642 = vmand %vm546, %vm610
        %vm643 = vmand %vm547, %vm611
        %vm644 = vmand %vm548, %vm612
        %vm645 = vmand %vm549, %vm613
        %vm646 = vmand %vm550, %vm614
        %vm647 = vmand %vm551, %vm615
        %vm648 = vmand %vm552, %vm616
        %vm649 = vmand %vm553, %vm617
        %vm650 = vmand %vm554, %vm618
        %vm651 = vmand %vm555, %vm619
        %v652 = vsel %vm620, 1, 0
        %v653 = vsel %vm621, 1, 0
        %v654 = vsel %vm622, 1, 0
        %v655 = vsel %vm623, 1, 0
        %v656 = vsel %vm624, 1, 0
        %v657 = vsel %vm625, 1, 0
        %v658 = vsel %vm626, 1, 0
        %v659 = vsel %vm627, 1, 0
        %v660 = vsel %vm628, 1, 0
        %v661 = vsel %vm629, 1, 0
        %v662 = vsel %vm630, 1, 0
        %v663 = vsel %vm631, 1, 0
        %v664 = vsel %vm632, 1, 0
        %v665 = vsel %vm633, 1, 0
        %v666 = vsel %vm634, 1, 0
        %v667 = vsel %vm635, 1, 0
        %v668 = vsel %vm636, 1, 0
        %v669 = vsel %vm637, 1, 0
        %v670 = vsel %vm638, 1, 0
        %v671 = vsel %vm639, 1, 0
        %v672 = vsel %vm640, 1, 0
        %v673 = vsel %vm641, 1, 0
        %v674 = vsel %vm642, 1, 0
        %v675 = vsel %vm643, 1, 0
        %v676 = vsel %vm644, 1, 0
        %v677 = vsel %vm645, 1, 0
        %v678 = vsel %vm646, 1, 0
        %v679 = vsel %vm647, 1, 0
        %v680 = vsel %vm648, 1, 0
        %v681 = vsel %vm649, 1, 0
        %v682 = vsel %vm650, 1, 0
        %v683 = vsel %vm651, 1, 0
        %v684 = vcvt.s32.f32 %v652
        %v685 = vcvt.s32.f32 %v653
        %v686 = vcvt.s32.f32 %v654
        %v687 = vcvt.s32.f32 %v655
        %v688 = vcvt.s32.f32 %v656
        %v689 = vcvt.s32.f32 %v657
        %v690 = vcvt.s32.f32 %v658
        %v691 = vcvt.s32.f32 %v659
        %v692 = vcvt.s32.f32 %v660
        %v693 = vcvt.s32.f32 %v661
        %v694 = vcvt.s32.f32 %v662
        %v695 = vcvt.s32.f32 %v663
        %v696 = vcvt.s32.f32 %v664
        %v697 = vcvt.s32.f32 %v665
        %v698 = vcvt.s32.f32 %v666
        %v699 = vcvt.s32.f32 %v667
        %v700 = vcvt.s32.f32 %v668
        %v701 = vcvt.s32.f32 %v669
        %v702 = vcvt.s32.f32 %v670
        %v703 = vcvt.s32.f32 %v671
        %v704 = vcvt.s32.f32 %v672
        %v705 = vcvt.s32.f32 %v673
        %v706 = vcvt.s32.f32 %v674
        %v707 = vcvt.s32.f32 %v675
        %v708 = vcvt.s32.f32 %v676
        %v709 = vcvt.s32.f32 %v677
        %v710 = vcvt.s32.f32 %v678
        %v711 = vcvt.s32.f32 %v679
        %v712 = vcvt.s32.f32 %v680
        %v713 = vcvt.s32.f32 %v681
        %v714 = vcvt.s32.f32 %v682
        %v715 = vcvt.s32.f32 %v683
        %p716 = scmp.eq.s32.totalorder %s23, 0
        %p717 = scmp.eq.s32.totalorder %s24, 0
        %p718 = pnand %p716, %p717
        %p719 = pneg %p718
        // Predicated region
        $region41: #{tpu_custom_call.1} parent=39 // pred_check
          _
        $region42: #{tpu_custom_call.1} parent=39 // pred_check_branch
          %721 = sbr.rel (%p718) target = $region44
        $region43: #{tpu_custom_call.1} parent=39 // pred_region
          %722 = vst [vmem:[#allocation2] sm:$0xff] 0.0
          %723 = vst [vmem:[#allocation2 + $0x8] sm:$0xff] 0.0
          %vm724 = vcmask 7168
          %725 = vst.msk [vmem:[#allocation2 + $0x10] sm:$0xff] %vm724, 0.0
        $region44: #{tpu_custom_call.1} parent=39 // pred_fallthru
          _
        // Predicated region
        $region45: #{tpu_custom_call.1} parent=39 // pred_check
          %p726 = pneg %p716
        $region46: #{tpu_custom_call.1} parent=39 // pred_check_branch
          %728 = sbr.rel (%p726) target = $region48
        $region47: #{tpu_custom_call.1} parent=39 // pred_region
          %v729 = vmul.f32 %v263, %v263
          %v730 = vmul.f32 %v264, %v264
          %v731 = vmul.f32 %v265, %v265
          %v732 = vmul.f32 %v266, %v266
          %v733 = vmul.f32 %v267, %v267
          %v734 = vmul.f32 %v268, %v268
          %v735 = vmul.f32 %v269, %v269
          %v736 = vmul.f32 %v270, %v270
          %v737 = vmul.f32 %v271, %v271
          %v738 = vmul.f32 %v272, %v272
          %v739 = vmul.f32 %v273, %v273
          %v740 = vmul.f32 %v274, %v274
          %v741 = vmul.f32 %v275, %v275
          %v742 = vmul.f32 %v276, %v276
          %v743 = vmul.f32 %v277, %v277
          %v744 = vmul.f32 %v278, %v278
          %v745 = vmul.f32 %v279, %v279
          %v746 = vmul.f32 %v280, %v280
          %v747 = vmul.f32 %v281, %v281
          %v748 = vmul.f32 %v282, %v282
          %v749 = vmul.f32 %v283, %v283
          %v750 = vmul.f32 %v284, %v284
          %v751 = vmul.f32 %v285, %v285
          %v752 = vmul.f32 %v286, %v286
          %v753 = vmul.f32 %v287, %v287
          %v754 = vmul.f32 %v288, %v288
          %v755 = vmul.f32 %v289, %v289
          %v756 = vmul.f32 %v290, %v290
          %v757 = vmul.f32 %v291, %v291
          %v758 = vmul.f32 %v292, %v292
          %v759 = vmul.f32 %v293, %v293
          %v760 = vmul.f32 %v294, %v294
          %v761 = vld [vmem:[#allocation2] sm:$0xff]
          %v762 = vld [vmem:[#allocation2 + $0x8] sm:$0xff]
          %v763 = vld [vmem:[#allocation2 + $0x10] sm:$0xff]
          %764 = vxpose.xlu0.b32.start [1/16] %v684, 128
          %765 = vxpose.xlu0.b32.cont [2/16] %v685, 128
          %766 = vxpose.xlu0.b32.cont [3/16] %v686, 128
          %767 = vxpose.xlu0.b32.cont [4/16] %v687, 128
          %768 = vxpose.xlu0.b32.cont [5/16] %v688, 128
          %769 = vxpose.xlu0.b32.cont [6/16] %v689, 128
          %770 = vxpose.xlu0.b32.cont [7/16] %v690, 128
          %771 = vxpose.xlu0.b32.cont [8/16] %v691, 128
          %772 = vxpose.xlu0.b32.cont [9/16] %v692, 128
          %773 = vxpose.xlu0.b32.cont [10/16] %v693, 128
          %774 = vxpose.xlu0.b32.cont [11/16] %v694, 128
          %775 = vxpose.xlu0.b32.cont [12/16] %v695, 128
          %776 = vxpose.xlu0.b32.cont [13/16] %v696, 128
          %777 = vxpose.xlu0.b32.cont [14/16] %v697, 128
          %778 = vxpose.xlu0.b32.cont [15/16] %v698, 128
          %779 = vxpose.xlu0.b32.end [16/16] %v699, 128
          %v780 = vpop.trf.xlu0
          %v781 = vpop.trf.xlu0
          %v782 = vpop.trf.xlu0
          %v783 = vpop.trf.xlu0
          %v784 = vpop.trf.xlu0
          %v785 = vpop.trf.xlu0
          %v786 = vpop.trf.xlu0
          %v787 = vpop.trf.xlu0
          %v788 = vpop.trf.xlu0
          %v789 = vpop.trf.xlu0
          %v790 = vpop.trf.xlu0
          %v791 = vpop.trf.xlu0
          %v792 = vpop.trf.xlu0
          %v793 = vpop.trf.xlu0
          %v794 = vpop.trf.xlu0
          %v795 = vpop.trf.xlu0
          %796 = vxpose.xlu0.b32.start [1/16] %v700, 128
          %797 = vxpose.xlu0.b32.cont [2/16] %v701, 128
          %798 = vxpose.xlu0.b32.cont [3/16] %v702, 128
          %799 = vxpose.xlu0.b32.cont [4/16] %v703, 128
          %800 = vxpose.xlu0.b32.cont [5/16] %v704, 128
          %801 = vxpose.xlu0.b32.cont [6/16] %v705, 128
          %802 = vxpose.xlu0.b32.cont [7/16] %v706, 128
          %803 = vxpose.xlu0.b32.cont [8/16] %v707, 128
          %804 = vxpose.xlu0.b32.cont [9/16] %v708, 128
          %805 = vxpose.xlu0.b32.cont [10/16] %v709, 128
          %806 = vxpose.xlu0.b32.cont [11/16] %v710, 128
          %807 = vxpose.xlu0.b32.cont [12/16] %v711, 128
          %808 = vxpose.xlu0.b32.cont [13/16] %v712, 128
          %809 = vxpose.xlu0.b32.cont [14/16] %v713, 128
          %810 = vxpose.xlu0.b32.cont [15/16] %v714, 128
          %811 = vxpose.xlu0.b32.end [16/16] %v715, 128
          %v812 = vpop.trf.xlu0
          %v813 = vpop.trf.xlu0
          %v814 = vpop.trf.xlu0
          %v815 = vpop.trf.xlu0
          %v816 = vpop.trf.xlu0
          %v817 = vpop.trf.xlu0
          %v818 = vpop.trf.xlu0
          %v819 = vpop.trf.xlu0
          %v820 = vpop.trf.xlu0
          %v821 = vpop.trf.xlu0
          %v822 = vpop.trf.xlu0
          %v823 = vpop.trf.xlu0
          %v824 = vpop.trf.xlu0
          %v825 = vpop.trf.xlu0
          %v826 = vpop.trf.xlu0
          %v827 = vpop.trf.xlu0
          %828 = vmatpush.msra.mxu0 %v278
          %829 = vmatpush.msra.mxu0 %v277
          %830 = vmatpush.msra.mxu0 %v276
          %831 = vmatpush.msra.mxu0 %v275
          %832 = vmatpush.msra.mxu0 %v274
          %833 = vmatpush.msra.mxu0 %v273
          %834 = vmatpush.msra.mxu0 %v272
          %835 = vmatpush.msra.mxu0 %v271
          %836 = vmatpush.msra.mxu0 %v270
          %837 = vmatpush.msra.mxu0 %v269
          %838 = vmatpush.msra.mxu0 %v268
          %839 = vmatpush.msra.mxu0 %v267
          %840 = vmatpush.msra.mxu0 %v266
          %841 = vmatpush.msra.mxu0 %v265
          %842 = vmatpush.msra.mxu0 %v264
          %843 = vmatpush.msra.mxu0 %v263
          %844 = vmatmul.f32.gmra.mxu0 %v780
          %v845 = vpop.f32.mrf.mxu0
          %v846 = vadd.f32 0.0, %v845
          %847 = vdwg.mxu0
          %848 = vmatpush.msra.mxu0 %v294
          %849 = vmatpush.msra.mxu0 %v293
          %850 = vmatpush.msra.mxu0 %v292
          %851 = vmatpush.msra.mxu0 %v291
          %852 = vmatpush.msra.mxu0 %v290
          %853 = vmatpush.msra.mxu0 %v289
          %854 = vmatpush.msra.mxu0 %v288
          %855 = vmatpush.msra.mxu0 %v287
          %856 = vmatpush.msra.mxu0 %v286
          %857 = vmatpush.msra.mxu0 %v285
          %858 = vmatpush.msra.mxu0 %v284
          %859 = vmatpush.msra.mxu0 %v283
          %860 = vmatpush.msra.mxu0 %v282
          %861 = vmatpush.msra.mxu0 %v281
          %862 = vmatpush.msra.mxu0 %v280
          %863 = vmatpush.msra.mxu0 %v279
          %864 = vmatmul.f32.gmra.mxu0 %v812
          %v865 = vpop.f32.mrf.mxu0
          %v866 = vadd.f32 %v846, %v865
          %867 = vdwg.mxu0
          %868 = vmatpush.msra.mxu0 %v744
          %869 = vmatpush.msra.mxu0 %v743
          %870 = vmatpush.msra.mxu0 %v742
          %871 = vmatpush.msra.mxu0 %v741
          %872 = vmatpush.msra.mxu0 %v740
          %873 = vmatpush.msra.mxu0 %v739
          %874 = vmatpush.msra.mxu0 %v738
          %875 = vmatpush.msra.mxu0 %v737
          %876 = vmatpush.msra.mxu0 %v736
          %877 = vmatpush.msra.mxu0 %v735
          %878 = vmatpush.msra.mxu0 %v734
          %879 = vmatpush.msra.mxu0 %v733
          %880 = vmatpush.msra.mxu0 %v732
          %881 = vmatpush.msra.mxu0 %v731
          %882 = vmatpush.msra.mxu0 %v730
          %883 = vmatpush.msra.mxu0 %v729
          %884 = vmatmul.f32.gmra.mxu0 %v780
          %v885 = vpop.f32.mrf.mxu0
          %v886 = vadd.f32 0.0, %v885
          %887 = vdwg.mxu0
          %888 = vmatpush.msra.mxu0 %v760
          %889 = vmatpush.msra.mxu0 %v759
          %890 = vmatpush.msra.mxu0 %v758
          %891 = vmatpush.msra.mxu0 %v757
          %892 = vmatpush.msra.mxu0 %v756
          %893 = vmatpush.msra.mxu0 %v755
          %894 = vmatpush.msra.mxu0 %v754
          %895 = vmatpush.msra.mxu0 %v753
          %896 = vmatpush.msra.mxu0 %v752
          %897 = vmatpush.msra.mxu0 %v751
          %898 = vmatpush.msra.mxu0 %v750
          %899 = vmatpush.msra.mxu0 %v749
          %900 = vmatpush.msra.mxu0 %v748
          %901 = vmatpush.msra.mxu0 %v747
          %902 = vmatpush.msra.mxu0 %v746
          %903 = vmatpush.msra.mxu0 %v745
          %904 = vmatmul.f32.gmra.mxu0 %v812
          %v905 = vpop.f32.mrf.mxu0
          %v906 = vadd.f32 %v886, %v905
          %907 = vdwg.mxu0
          %908 = vmatpush.msra.mxu0 1.0
          %909 = vmatpush.msra.mxu0 1.0
          %910 = vmatpush.msra.mxu0 1.0
          %911 = vmatpush.msra.mxu0 1.0
          %912 = vmatpush.msra.mxu0 1.0
          %913 = vmatpush.msra.mxu0 1.0
          %914 = vmatpush.msra.mxu0 1.0
          %915 = vmatpush.msra.mxu0 1.0
          %916 = vmatpush.msra.mxu0 1.0
          %917 = vmatpush.msra.mxu0 1.0
          %918 = vmatpush.msra.mxu0 1.0
          %919 = vmatpush.msra.mxu0 1.0
          %920 = vmatpush.msra.mxu0 1.0
          %921 = vmatpush.msra.mxu0 1.0
          %922 = vmatpush.msra.mxu0 1.0
          %923 = vmatpush.msra.mxu0 1.0
          %924 = vmatmul.f32.gmra.mxu0 %v780
          %v925 = vpop.f32.mrf.mxu0
          %v926 = vadd.f32 0.0, %v925
          %927 = vdwg.mxu0
          %928 = vmatpush.msra.mxu0 1.0
          %929 = vmatpush.msra.mxu0 1.0
          %930 = vmatpush.msra.mxu0 1.0
          %931 = vmatpush.msra.mxu0 1.0
          %932 = vmatpush.msra.mxu0 1.0
          %933 = vmatpush.msra.mxu0 1.0
          %934 = vmatpush.msra.mxu0 1.0
          %935 = vmatpush.msra.mxu0 1.0
          %936 = vmatpush.msra.mxu0 1.0
          %937 = vmatpush.msra.mxu0 1.0
          %938 = vmatpush.msra.mxu0 1.0
          %939 = vmatpush.msra.mxu0 1.0
          %940 = vmatpush.msra.mxu0 1.0
          %941 = vmatpush.msra.mxu0 1.0
          %942 = vmatpush.msra.mxu0 1.0
          %943 = vmatpush.msra.mxu0 1.0
          %944 = vmatmul.f32.gmra.mxu0 %v812
          %v945 = vpop.f32.mrf.mxu0
          %v946 = vadd.f32 %v926, %v945
          %947 = vdwg.mxu0
          %v948 = vadd.f32 %v761, %v866
          %v949 = vadd.f32 %v762, %v906
          %v950 = vadd.f32 %v763, %v946
          %951 = vst [vmem:[#allocation2] sm:$0xff] %v948
          %952 = vst [vmem:[#allocation2 + $0x8] sm:$0xff] %v949
          %vm953 = vcmask 7168
          %954 = vst.msk [vmem:[#allocation2 + $0x10] sm:$0xff] %vm953, %v950
        $region48: #{tpu_custom_call.1} parent=39 // pred_fallthru
          _
        %p955 = scmp.eq.s32.totalorder %s23, 1
        %p956 = pnand %p955, %p717
        %p957 = pneg %p956
        // Predicated region
        $region49: #{tpu_custom_call.1} parent=39 // pred_check
          _
        $region50: #{tpu_custom_call.1} parent=39 // pred_check_branch
          %959 = sbr.rel (%p956) target = $region52
        $region51: #{tpu_custom_call.1} parent=39 // pred_region
          %v960 = vld [vmem:[#allocation2] sm:$0xff]
          %v961 = vld [vmem:[#allocation2 + $0x8] sm:$0xff]
          %v962 = vld [vmem:[#allocation2 + $0x10] sm:$0xff]
          %v963 = vmax.f32 %v962, 1.0
          %v964 = vrcp.pop %v963
          %v965 = vmul.f32 %v963, %v964
          %v966 = vsub.f32 1.0, %v965
          %v967 = vmul.f32 %v964, %v966
          %v968 = vadd.f32 %v964, %v967
          %vm969 = vweird.f32 %v963
          %vm970 = vweird.f32 %v964
          %vm971 = vmor %vm969, %vm970
          %v972 = vsel %vm971, %v964, %v968
          %v973 = vand.u32 2147483647, %v963
          %vm974 = vcmp.eq.f32.partialorder %v973, 8.507059e+37
          %v975 = vand.u32 %v963, 2147483648
          %v976 = vor.u32 1.1754944e-38, %v975
          %v977 = vsel %vm974, %v976, %v972
          %v978 = vmul.f32 1.0, %v977
          %980 = vset.pattern.permute.xlu0 0
          %981 = vperm.xlu0 %980, %v978
          %v982 = vpop.permute.xlu0 %981
          %v984 = vmul.f32 %v960, %v982
          %v985 = vmul.f32 %v961, %v982
          %v986 = vld [vmem:[%s2] sm:$0x1]
          %v987 = vmul.f32 %v986, 2.0
          %v988 = vmul.f32 %v986, %v986
          %v989 = vsub.f32 %v987, %v988
          %v990 = vmul.f32 %v984, %v984
          %v992 = vperm.slane %v989, 0
          %v994 = vmul.f32 %v992, %v990
          %v995 = vsub.f32 %v985, %v994
          %v996 = vadd.f32 %v995, 1e-09
          %v997 = vrsqrt.pop %v996
          %v998 = vmul.f32 %v997, %v996
          %v999 = vmul.f32 %v998, %v997
          %v1000 = vmul.f32 0.5, %v999
          %v1001 = vsub.f32 1.5, %v1000
          %v1002 = vmul.f32 %v997, %v1001
          %vm1003 = vweird.f32 %v996
          %vm1004 = vweird.f32 %v997
          %vm1005 = vmor %vm1003, %vm1004
          %v1006 = vsel %vm1005, %v997, %v1002
          %1007 = vst [vmem:[#allocation3] sm:$0xff] %v984
          %1008 = vst [vmem:[#allocation3 + $0x8] sm:$0xff] %v1006
        $region52: #{tpu_custom_call.1} parent=39 // pred_fallthru
          _
        // Predicated region
        $region53: #{tpu_custom_call.1} parent=39 // pred_check
          %p1009 = pneg %p955
        $region54: #{tpu_custom_call.1} parent=39 // pred_check_branch
          %1011 = sbr.rel (%p1009) target = $region56
        $region55: #{tpu_custom_call.1} parent=39 // pred_region
          %v1012 = vld [vmem:[#allocation3] sm:$0xff]
          %v1013 = vld [vmem:[#allocation3 + $0x8] sm:$0xff]
          %vm1014 = vcmask 64512
          %v1016 = vsel %vm1014, %v684, 0
          %v1019 = vsel %vm1014, %v685, 0
          %v1022 = vsel %vm1014, %v686, 0
          %v1025 = vsel %vm1014, %v687, 0
          %v1028 = vsel %vm1014, %v688, 0
          %v1031 = vsel %vm1014, %v689, 0
          %v1034 = vsel %vm1014, %v690, 0
          %v1037 = vsel %vm1014, %v691, 0
          %v1040 = vsel %vm1014, %v692, 0
          %v1043 = vsel %vm1014, %v693, 0
          %v1046 = vsel %vm1014, %v694, 0
          %v1049 = vsel %vm1014, %v695, 0
          %v1052 = vsel %vm1014, %v696, 0
          %v1055 = vsel %vm1014, %v697, 0
          %v1058 = vsel %vm1014, %v698, 0
          %v1061 = vsel %vm1014, %v699, 0
          %v1064 = vsel %vm1014, %v700, 0
          %v1067 = vsel %vm1014, %v701, 0
          %v1070 = vsel %vm1014, %v702, 0
          %v1073 = vsel %vm1014, %v703, 0
          %v1076 = vsel %vm1014, %v704, 0
          %v1079 = vsel %vm1014, %v705, 0
          %v1082 = vsel %vm1014, %v706, 0
          %v1085 = vsel %vm1014, %v707, 0
          %v1088 = vsel %vm1014, %v708, 0
          %v1091 = vsel %vm1014, %v709, 0
          %v1094 = vsel %vm1014, %v710, 0
          %v1097 = vsel %vm1014, %v711, 0
          %v1100 = vsel %vm1014, %v712, 0
          %v1103 = vsel %vm1014, %v713, 0
          %v1106 = vsel %vm1014, %v714, 0
          %v1109 = vsel %vm1014, %v715, 0
          %1111 = vmatpush.msra.mxu0 0.0
          %1112 = vmatpush.msra.mxu0 0.0
          %1113 = vmatpush.msra.mxu0 0.0
          %1114 = vmatpush.msra.mxu0 0.0
          %1115 = vmatpush.msra.mxu0 0.0
          %1116 = vmatpush.msra.mxu0 0.0
          %1117 = vmatpush.msra.mxu0 0.0
          %1118 = vmatpush.msra.mxu0 0.0
          %1119 = vmatpush.msra.mxu0 0.0
          %1120 = vmatpush.msra.mxu0 0.0
          %1121 = vmatpush.msra.mxu0 0.0
          %1122 = vmatpush.msra.mxu0 0.0
          %1123 = vmatpush.msra.mxu0 0.0
          %1124 = vmatpush.msra.mxu0 0.0
          %1125 = vmatpush.msra.mxu0 0.0
          %1126 = vmatpush.msra.mxu0 %v1012
          %1127 = vmatmul.f32.gmra.mxu0 %v1016
          %v1128 = vpop.f32.mrf.mxu0
          %v1129 = vadd.f32 0.0, %v1128
          %1130 = vmatmul.f32.gmra.mxu0 %v1019
          %v1131 = vpop.f32.mrf.mxu0
          %v1132 = vadd.f32 0.0, %v1131
          %1133 = vmatmul.f32.gmra.mxu0 %v1022
          %v1134 = vpop.f32.mrf.mxu0
          %v1135 = vadd.f32 0.0, %v1134
          %1136 = vmatmul.f32.gmra.mxu0 %v1025
          %v1137 = vpop.f32.mrf.mxu0
          %v1138 = vadd.f32 0.0, %v1137
          %1139 = vmatmul.f32.gmra.mxu0 %v1028
          %v1140 = vpop.f32.mrf.mxu0
          %v1141 = vadd.f32 0.0, %v1140
          %1142 = vmatmul.f32.gmra.mxu0 %v1031
          %v1143 = vpop.f32.mrf.mxu0
          %v1144 = vadd.f32 0.0, %v1143
          %1145 = vmatmul.f32.gmra.mxu0 %v1034
          %v1146 = vpop.f32.mrf.mxu0
          %v1147 = vadd.f32 0.0, %v1146
          %1148 = vmatmul.f32.gmra.mxu0 %v1037
          %v1149 = vpop.f32.mrf.mxu0
          %v1150 = vadd.f32 0.0, %v1149
          %1151 = vmatmul.f32.gmra.mxu0 %v1040
          %v1152 = vpop.f32.mrf.mxu0
          %v1153 = vadd.f32 0.0, %v1152
          %1154 = vmatmul.f32.gmra.mxu0 %v1043
          %v1155 = vpop.f32.mrf.mxu0
          %v1156 = vadd.f32 0.0, %v1155
          %1157 = vmatmul.f32.gmra.mxu0 %v1046
          %v1158 = vpop.f32.mrf.mxu0
          %v1159 = vadd.f32 0.0, %v1158
          %1160 = vmatmul.f32.gmra.mxu0 %v1049
          %v1161 = vpop.f32.mrf.mxu0
          %v1162 = vadd.f32 0.0, %v1161
          %1163 = vmatmul.f32.gmra.mxu0 %v1052
          %v1164 = vpop.f32.mrf.mxu0
          %v1165 = vadd.f32 0.0, %v1164
          %1166 = vmatmul.f32.gmra.mxu0 %v1055
          %v1167 = vpop.f32.mrf.mxu0
          %v1168 = vadd.f32 0.0, %v1167
          %1169 = vmatmul.f32.gmra.mxu0 %v1058
          %v1170 = vpop.f32.mrf.mxu0
          %v1171 = vadd.f32 0.0, %v1170
          %1172 = vmatmul.f32.gmra.mxu0 %v1061
          %v1173 = vpop.f32.mrf.mxu0
          %v1174 = vadd.f32 0.0, %v1173
          %1175 = vmatmul.f32.gmra.mxu0 %v1064
          %v1176 = vpop.f32.mrf.mxu0
          %v1177 = vadd.f32 0.0, %v1176
          %1178 = vmatmul.f32.gmra.mxu0 %v1067
          %v1179 = vpop.f32.mrf.mxu0
          %v1180 = vadd.f32 0.0, %v1179
          %1181 = vmatmul.f32.gmra.mxu0 %v1070
          %v1182 = vpop.f32.mrf.mxu0
          %v1183 = vadd.f32 0.0, %v1182
          %1184 = vmatmul.f32.gmra.mxu0 %v1073
          %v1185 = vpop.f32.mrf.mxu0
          %v1186 = vadd.f32 0.0, %v1185
          %1187 = vmatmul.f32.gmra.mxu0 %v1076
          %v1188 = vpop.f32.mrf.mxu0
          %v1189 = vadd.f32 0.0, %v1188
          %1190 = vmatmul.f32.gmra.mxu0 %v1079
          %v1191 = vpop.f32.mrf.mxu0
          %v1192 = vadd.f32 0.0, %v1191
          %1193 = vmatmul.f32.gmra.mxu0 %v1082
          %v1194 = vpop.f32.mrf.mxu0
          %v1195 = vadd.f32 0.0, %v1194
          %1196 = vmatmul.f32.gmra.mxu0 %v1085
          %v1197 = vpop.f32.mrf.mxu0
          %v1198 = vadd.f32 0.0, %v1197
          %1199 = vmatmul.f32.gmra.mxu0 %v1088
          %v1200 = vpop.f32.mrf.mxu0
          %v1201 = vadd.f32 0.0, %v1200
          %1202 = vmatmul.f32.gmra.mxu0 %v1091
          %v1203 = vpop.f32.mrf.mxu0
          %v1204 = vadd.f32 0.0, %v1203
          %1205 = vmatmul.f32.gmra.mxu0 %v1094
          %v1206 = vpop.f32.mrf.mxu0
          %v1207 = vadd.f32 0.0, %v1206
          %1208 = vmatmul.f32.gmra.mxu0 %v1097
          %v1209 = vpop.f32.mrf.mxu0
          %v1210 = vadd.f32 0.0, %v1209
          %1211 = vmatmul.f32.gmra.mxu0 %v1100
          %v1212 = vpop.f32.mrf.mxu0
          %v1213 = vadd.f32 0.0, %v1212
          %1214 = vmatmul.f32.gmra.mxu0 %v1103
          %v1215 = vpop.f32.mrf.mxu0
          %v1216 = vadd.f32 0.0, %v1215
          %1217 = vmatmul.f32.gmra.mxu0 %v1106
          %v1218 = vpop.f32.mrf.mxu0
          %v1219 = vadd.f32 0.0, %v1218
          %1220 = vmatmul.f32.gmra.mxu0 %v1109
          %v1221 = vpop.f32.mrf.mxu0
          %v1222 = vadd.f32 0.0, %v1221
          %1223 = vdwg.mxu0
          %1224 = vmatpush.msra.mxu0 0.0
          %1225 = vmatpush.msra.mxu0 0.0
          %1226 = vmatpush.msra.mxu0 0.0
          %1227 = vmatpush.msra.mxu0 0.0
          %1228 = vmatpush.msra.mxu0 0.0
          %1229 = vmatpush.msra.mxu0 0.0
          %1230 = vmatpush.msra.mxu0 0.0
          %1231 = vmatpush.msra.mxu0 0.0
          %1232 = vmatpush.msra.mxu0 0.0
          %1233 = vmatpush.msra.mxu0 0.0
          %1234 = vmatpush.msra.mxu0 0.0
          %1235 = vmatpush.msra.mxu0 0.0
          %1236 = vmatpush.msra.mxu0 0.0
          %1237 = vmatpush.msra.mxu0 0.0
          %1238 = vmatpush.msra.mxu0 0.0
          %1239 = vmatpush.msra.mxu0 %v1013
          %1240 = vmatmul.f32.gmra.mxu0 %v1016
          %v1241 = vpop.f32.mrf.mxu0
          %v1242 = vadd.f32 0.0, %v1241
          %1243 = vmatmul.f32.gmra.mxu0 %v1019
          %v1244 = vpop.f32.mrf.mxu0
          %v1245 = vadd.f32 0.0, %v1244
          %1246 = vmatmul.f32.gmra.mxu0 %v1022
          %v1247 = vpop.f32.mrf.mxu0
          %v1248 = vadd.f32 0.0, %v1247
          %1249 = vmatmul.f32.gmra.mxu0 %v1025
          %v1250 = vpop.f32.mrf.mxu0
          %v1251 = vadd.f32 0.0, %v1250
          %1252 = vmatmul.f32.gmra.mxu0 %v1028
          %v1253 = vpop.f32.mrf.mxu0
          %v1254 = vadd.f32 0.0, %v1253
          %1255 = vmatmul.f32.gmra.mxu0 %v1031
          %v1256 = vpop.f32.mrf.mxu0
          %v1257 = vadd.f32 0.0, %v1256
          %1258 = vmatmul.f32.gmra.mxu0 %v1034
          %v1259 = vpop.f32.mrf.mxu0
          %v1260 = vadd.f32 0.0, %v1259
          %1261 = vmatmul.f32.gmra.mxu0 %v1037
          %v1262 = vpop.f32.mrf.mxu0
          %v1263 = vadd.f32 0.0, %v1262
          %1264 = vmatmul.f32.gmra.mxu0 %v1040
          %v1265 = vpop.f32.mrf.mxu0
          %v1266 = vadd.f32 0.0, %v1265
          %1267 = vmatmul.f32.gmra.mxu0 %v1043
          %v1268 = vpop.f32.mrf.mxu0
          %v1269 = vadd.f32 0.0, %v1268
          %1270 = vmatmul.f32.gmra.mxu0 %v1046
          %v1271 = vpop.f32.mrf.mxu0
          %v1272 = vadd.f32 0.0, %v1271
          %1273 = vmatmul.f32.gmra.mxu0 %v1049
          %v1274 = vpop.f32.mrf.mxu0
          %v1275 = vadd.f32 0.0, %v1274
          %1276 = vmatmul.f32.gmra.mxu0 %v1052
          %v1277 = vpop.f32.mrf.mxu0
          %v1278 = vadd.f32 0.0, %v1277
          %1279 = vmatmul.f32.gmra.mxu0 %v1055
          %v1280 = vpop.f32.mrf.mxu0
          %v1281 = vadd.f32 0.0, %v1280
          %1282 = vmatmul.f32.gmra.mxu0 %v1058
          %v1283 = vpop.f32.mrf.mxu0
          %v1284 = vadd.f32 0.0, %v1283
          %1285 = vmatmul.f32.gmra.mxu0 %v1061
          %v1286 = vpop.f32.mrf.mxu0
          %v1287 = vadd.f32 0.0, %v1286
          %1288 = vmatmul.f32.gmra.mxu0 %v1064
          %v1289 = vpop.f32.mrf.mxu0
          %v1290 = vadd.f32 0.0, %v1289
          %1291 = vmatmul.f32.gmra.mxu0 %v1067
          %v1292 = vpop.f32.mrf.mxu0
          %v1293 = vadd.f32 0.0, %v1292
          %1294 = vmatmul.f32.gmra.mxu0 %v1070
          %v1295 = vpop.f32.mrf.mxu0
          %v1296 = vadd.f32 0.0, %v1295
          %1297 = vmatmul.f32.gmra.mxu0 %v1073
          %v1298 = vpop.f32.mrf.mxu0
          %v1299 = vadd.f32 0.0, %v1298
          %1300 = vmatmul.f32.gmra.mxu0 %v1076
          %v1301 = vpop.f32.mrf.mxu0
          %v1302 = vadd.f32 0.0, %v1301
          %1303 = vmatmul.f32.gmra.mxu0 %v1079
          %v1304 = vpop.f32.mrf.mxu0
          %v1305 = vadd.f32 0.0, %v1304
          %1306 = vmatmul.f32.gmra.mxu0 %v1082
          %v1307 = vpop.f32.mrf.mxu0
          %v1308 = vadd.f32 0.0, %v1307
          %1309 = vmatmul.f32.gmra.mxu0 %v1085
          %v1310 = vpop.f32.mrf.mxu0
          %v1311 = vadd.f32 0.0, %v1310
          %1312 = vmatmul.f32.gmra.mxu0 %v1088
          %v1313 = vpop.f32.mrf.mxu0
          %v1314 = vadd.f32 0.0, %v1313
          %1315 = vmatmul.f32.gmra.mxu0 %v1091
          %v1316 = vpop.f32.mrf.mxu0
          %v1317 = vadd.f32 0.0, %v1316
          %1318 = vmatmul.f32.gmra.mxu0 %v1094
          %v1319 = vpop.f32.mrf.mxu0
          %v1320 = vadd.f32 0.0, %v1319
          %1321 = vmatmul.f32.gmra.mxu0 %v1097
          %v1322 = vpop.f32.mrf.mxu0
          %v1323 = vadd.f32 0.0, %v1322
          %1324 = vmatmul.f32.gmra.mxu0 %v1100
          %v1325 = vpop.f32.mrf.mxu0
          %v1326 = vadd.f32 0.0, %v1325
          %1327 = vmatmul.f32.gmra.mxu0 %v1103
          %v1328 = vpop.f32.mrf.mxu0
          %v1329 = vadd.f32 0.0, %v1328
          %1330 = vmatmul.f32.gmra.mxu0 %v1106
          %v1331 = vpop.f32.mrf.mxu0
          %v1332 = vadd.f32 0.0, %v1331
          %1333 = vmatmul.f32.gmra.mxu0 %v1109
          %v1334 = vpop.f32.mrf.mxu0
          %v1335 = vadd.f32 0.0, %v1334
          %1336 = vdwg.mxu0
          %v1337 = vld [vmem:[%s2] sm:$0x1]
          %v1339 = vperm.slane %v1337, 0
          %v1341 = vmul.f32 %v1339, %v1129
          %v1342 = vmul.f32 %v1339, %v1132
          %v1343 = vmul.f32 %v1339, %v1135
          %v1344 = vmul.f32 %v1339, %v1138
          %v1345 = vmul.f32 %v1339, %v1141
          %v1346 = vmul.f32 %v1339, %v1144
          %v1347 = vmul.f32 %v1339, %v1147
          %v1348 = vmul.f32 %v1339, %v1150
          %v1349 = vmul.f32 %v1339, %v1153
          %v1350 = vmul.f32 %v1339, %v1156
          %v1351 = vmul.f32 %v1339, %v1159
          %v1352 = vmul.f32 %v1339, %v1162
          %v1353 = vmul.f32 %v1339, %v1165
          %v1354 = vmul.f32 %v1339, %v1168
          %v1355 = vmul.f32 %v1339, %v1171
          %v1356 = vmul.f32 %v1339, %v1174
          %v1357 = vmul.f32 %v1339, %v1177
          %v1358 = vmul.f32 %v1339, %v1180
          %v1359 = vmul.f32 %v1339, %v1183
          %v1360 = vmul.f32 %v1339, %v1186
          %v1361 = vmul.f32 %v1339, %v1189
          %v1362 = vmul.f32 %v1339, %v1192
          %v1363 = vmul.f32 %v1339, %v1195
          %v1364 = vmul.f32 %v1339, %v1198
          %v1365 = vmul.f32 %v1339, %v1201
          %v1366 = vmul.f32 %v1339, %v1204
          %v1367 = vmul.f32 %v1339, %v1207
          %v1368 = vmul.f32 %v1339, %v1210
          %v1369 = vmul.f32 %v1339, %v1213
          %v1370 = vmul.f32 %v1339, %v1216
          %v1371 = vmul.f32 %v1339, %v1219
          %v1372 = vmul.f32 %v1339, %v1222
          %v1373 = vsub.f32 %v263, %v1341
          %v1374 = vsub.f32 %v264, %v1342
          %v1375 = vsub.f32 %v265, %v1343
          %v1376 = vsub.f32 %v266, %v1344
          %v1377 = vsub.f32 %v267, %v1345
          %v1378 = vsub.f32 %v268, %v1346
          %v1379 = vsub.f32 %v269, %v1347
          %v1380 = vsub.f32 %v270, %v1348
          %v1381 = vsub.f32 %v271, %v1349
          %v1382 = vsub.f32 %v272, %v1350
          %v1383 = vsub.f32 %v273, %v1351
          %v1384 = vsub.f32 %v274, %v1352
          %v1385 = vsub.f32 %v275, %v1353
          %v1386 = vsub.f32 %v276, %v1354
          %v1387 = vsub.f32 %v277, %v1355
          %v1388 = vsub.f32 %v278, %v1356
          %v1389 = vsub.f32 %v279, %v1357
          %v1390 = vsub.f32 %v280, %v1358
          %v1391 = vsub.f32 %v281, %v1359
          %v1392 = vsub.f32 %v282, %v1360
          %v1393 = vsub.f32 %v283, %v1361
          %v1394 = vsub.f32 %v284, %v1362
          %v1395 = vsub.f32 %v285, %v1363
          %v1396 = vsub.f32 %v286, %v1364
          %v1397 = vsub.f32 %v287, %v1365
          %v1398 = vsub.f32 %v288, %v1366
          %v1399 = vsub.f32 %v289, %v1367
          %v1400 = vsub.f32 %v290, %v1368
          %v1401 = vsub.f32 %v291, %v1369
          %v1402 = vsub.f32 %v292, %v1370
          %v1403 = vsub.f32 %v293, %v1371
          %v1404 = vsub.f32 %v294, %v1372
          %v1405 = vld [vmem:[%s3] sm:$0x1]
          %v1407 = vperm.slane %v1405, 0
          %v1409 = vmul.f32 %v1407, %v1373
          %v1410 = vmul.f32 %v1407, %v1374
          %v1411 = vmul.f32 %v1407, %v1375
          %v1412 = vmul.f32 %v1407, %v1376
          %v1413 = vmul.f32 %v1407, %v1377
          %v1414 = vmul.f32 %v1407, %v1378
          %v1415 = vmul.f32 %v1407, %v1379
          %v1416 = vmul.f32 %v1407, %v1380
          %v1417 = vmul.f32 %v1407, %v1381
          %v1418 = vmul.f32 %v1407, %v1382
          %v1419 = vmul.f32 %v1407, %v1383
          %v1420 = vmul.f32 %v1407, %v1384
          %v1421 = vmul.f32 %v1407, %v1385
          %v1422 = vmul.f32 %v1407, %v1386
          %v1423 = vmul.f32 %v1407, %v1387
          %v1424 = vmul.f32 %v1407, %v1388
          %v1425 = vmul.f32 %v1407, %v1389
          %v1426 = vmul.f32 %v1407, %v1390
          %v1427 = vmul.f32 %v1407, %v1391
          %v1428 = vmul.f32 %v1407, %v1392
          %v1429 = vmul.f32 %v1407, %v1393
          %v1430 = vmul.f32 %v1407, %v1394
          %v1431 = vmul.f32 %v1407, %v1395
          %v1432 = vmul.f32 %v1407, %v1396
          %v1433 = vmul.f32 %v1407, %v1397
          %v1434 = vmul.f32 %v1407, %v1398
          %v1435 = vmul.f32 %v1407, %v1399
          %v1436 = vmul.f32 %v1407, %v1400
          %v1437 = vmul.f32 %v1407, %v1401
          %v1438 = vmul.f32 %v1407, %v1402
          %v1439 = vmul.f32 %v1407, %v1403
          %v1440 = vmul.f32 %v1407, %v1404
          %v1441 = vmul.f32 %v1409, %v1242
          %v1442 = vmul.f32 %v1410, %v1245
          %v1443 = vmul.f32 %v1411, %v1248
          %v1444 = vmul.f32 %v1412, %v1251
          %v1445 = vmul.f32 %v1413, %v1254
          %v1446 = vmul.f32 %v1414, %v1257
          %v1447 = vmul.f32 %v1415, %v1260
          %v1448 = vmul.f32 %v1416, %v1263
          %v1449 = vmul.f32 %v1417, %v1266
          %v1450 = vmul.f32 %v1418, %v1269
          %v1451 = vmul.f32 %v1419, %v1272
          %v1452 = vmul.f32 %v1420, %v1275
          %v1453 = vmul.f32 %v1421, %v1278
          %v1454 = vmul.f32 %v1422, %v1281
          %v1455 = vmul.f32 %v1423, %v1284
          %v1456 = vmul.f32 %v1424, %v1287
          %v1457 = vmul.f32 %v1425, %v1290
          %v1458 = vmul.f32 %v1426, %v1293
          %v1459 = vmul.f32 %v1427, %v1296
          %v1460 = vmul.f32 %v1428, %v1299
          %v1461 = vmul.f32 %v1429, %v1302
          %v1462 = vmul.f32 %v1430, %v1305
          %v1463 = vmul.f32 %v1431, %v1308
          %v1464 = vmul.f32 %v1432, %v1311
          %v1465 = vmul.f32 %v1433, %v1314
          %v1466 = vmul.f32 %v1434, %v1317
          %v1467 = vmul.f32 %v1435, %v1320
          %v1468 = vmul.f32 %v1436, %v1323
          %v1469 = vmul.f32 %v1437, %v1326
          %v1470 = vmul.f32 %v1438, %v1329
          %v1471 = vmul.f32 %v1439, %v1332
          %v1472 = vmul.f32 %v1440, %v1335
          %v1473 = vld [vmem:[%s4] sm:$0x1]
          %v1475 = vperm.slane %v1473, 0
          %v1477 = vadd.f32 %v1441, %v1475
          %v1478 = vadd.f32 %v1442, %v1475
          %v1479 = vadd.f32 %v1443, %v1475
          %v1480 = vadd.f32 %v1444, %v1475
          %v1481 = vadd.f32 %v1445, %v1475
          %v1482 = vadd.f32 %v1446, %v1475
          %v1483 = vadd.f32 %v1447, %v1475
          %v1484 = vadd.f32 %v1448, %v1475
          %v1485 = vadd.f32 %v1449, %v1475
          %v1486 = vadd.f32 %v1450, %v1475
          %v1487 = vadd.f32 %v1451, %v1475
          %v1488 = vadd.f32 %v1452, %v1475
          %v1489 = vadd.f32 %v1453, %v1475
          %v1490 = vadd.f32 %v1454, %v1475
          %v1491 = vadd.f32 %v1455, %v1475
          %v1492 = vadd.f32 %v1456, %v1475
          %v1493 = vadd.f32 %v1457, %v1475
          %v1494 = vadd.f32 %v1458, %v1475
          %v1495 = vadd.f32 %v1459, %v1475
          %v1496 = vadd.f32 %v1460, %v1475
          %v1497 = vadd.f32 %v1461, %v1475
          %v1498 = vadd.f32 %v1462, %v1475
          %v1499 = vadd.f32 %v1463, %v1475
          %v1500 = vadd.f32 %v1464, %v1475
          %v1501 = vadd.f32 %v1465, %v1475
          %v1502 = vadd.f32 %v1466, %v1475
          %v1503 = vadd.f32 %v1467, %v1475
          %v1504 = vadd.f32 %v1468, %v1475
          %v1505 = vadd.f32 %v1469, %v1475
          %v1506 = vadd.f32 %v1470, %v1475
          %v1507 = vadd.f32 %v1471, %v1475
          %v1508 = vadd.f32 %v1472, %v1475
          %1509 = vst [vmem:[%s248] sm:$0xff] %v1477
          %1510 = vst [vmem:[%s248 + $0x8] sm:$0xff] %v1478
          %1511 = vst [vmem:[%s248 + $0x10] sm:$0xff] %v1479
          %1512 = vst [vmem:[%s248 + $0x18] sm:$0xff] %v1480
          %1513 = vst [vmem:[%s248 + $0x20] sm:$0xff] %v1481
          %1514 = vst [vmem:[%s248 + $0x28] sm:$0xff] %v1482
          %1515 = vst [vmem:[%s248 + $0x30] sm:$0xff] %v1483
          %1516 = vst [vmem:[%s248 + $0x38] sm:$0xff] %v1484
          %1517 = vst [vmem:[%s248 + $0x40] sm:$0xff] %v1485
          %1518 = vst [vmem:[%s248 + $0x48] sm:$0xff] %v1486
          %1519 = vst [vmem:[%s248 + $0x50] sm:$0xff] %v1487
          %1520 = vst [vmem:[%s248 + $0x58] sm:$0xff] %v1488
          %1521 = vst [vmem:[%s248 + $0x60] sm:$0xff] %v1489
          %1522 = vst [vmem:[%s248 + $0x68] sm:$0xff] %v1490
          %1523 = vst [vmem:[%s248 + $0x70] sm:$0xff] %v1491
          %1524 = vst [vmem:[%s248 + $0x78] sm:$0xff] %v1492
          %1525 = vst [vmem:[%s248 + $0x80] sm:$0xff] %v1493
          %1526 = vst [vmem:[%s248 + $0x88] sm:$0xff] %v1494
          %1527 = vst [vmem:[%s248 + $0x90] sm:$0xff] %v1495
          %1528 = vst [vmem:[%s248 + $0x98] sm:$0xff] %v1496
          %1529 = vst [vmem:[%s248 + $0xa0] sm:$0xff] %v1497
          %1530 = vst [vmem:[%s248 + $0xa8] sm:$0xff] %v1498
          %1531 = vst [vmem:[%s248 + $0xb0] sm:$0xff] %v1499
          %1532 = vst [vmem:[%s248 + $0xb8] sm:$0xff] %v1500
          %1533 = vst [vmem:[%s248 + $0xc0] sm:$0xff] %v1501
          %1534 = vst [vmem:[%s248 + $0xc8] sm:$0xff] %v1502
          %1535 = vst [vmem:[%s248 + $0xd0] sm:$0xff] %v1503
          %1536 = vst [vmem:[%s248 + $0xd8] sm:$0xff] %v1504
          %1537 = vst [vmem:[%s248 + $0xe0] sm:$0xff] %v1505
          %1538 = vst [vmem:[%s248 + $0xe8] sm:$0xff] %v1506
          %1539 = vst [vmem:[%s248 + $0xf0] sm:$0xff] %v1507
          %1540 = vst [vmem:[%s248 + $0xf8] sm:$0xff] %v1508
        $region56: #{tpu_custom_call.1} parent=39 // pred_fallthru
          _
        %s1541 = sand.u32 %s156, 1
        %s1542 = scalar_lea.sflag [#allocation5], %s1541
        %s1543 = sand.u32 %s156, 1
        %s1544 = smul.addr %s1543, 256
        %s1545 = scalar_lea.vmem [#allocation4], %s1544
        // Predicated region
        $region57: #{tpu_custom_call.1} parent=39 // pred_check
          %p1546 = pneg %p166
        $region58: #{tpu_custom_call.1} parent=39 // pred_check_branch
          %1548 = sbr.rel (%p1546) target = $region60
        $region59: #{tpu_custom_call.1} parent=39 // pred_region
          %s1549 = smul.u32 %s24, %s23
          %s1550 = smul.u32 32, %s1549
          %1552 = vsyncadd %s1542, 0
          %s1553 = smul.addr %s1550, 8
          %s1554 = scalar_lea.hbm %s5, %s1553
          %s1555 = sshll.u32 %s1545, 4
          %s1556 = int_to_ptr.vmem [resolvable:$true] %s1555
          %s1557 = sshll.u32 %s1554, 4
          %s1558 = int_to_ptr.hbm [resolvable:$true] %s1557
          %1563 = dma.vmem_to_hbm [thread:$0]  %s1556, 4096, %s1558, %s1542, 128, 128, 8
        $region60: #{tpu_custom_call.1} parent=39 // pred_fallthru
          _
      $region40: #{tpu_custom_call.1} parent=5 // pred_fallthru
        _
      %p1564 = scmp.le.s32.totalorder 2, %s14
      // Predicated region
      $region61: #{tpu_custom_call.1} parent=5 // pred_check
        %p1565 = pneg %p1564
      $region62: #{tpu_custom_call.1} parent=5 // pred_check_branch
        %1567 = sbr.rel (%p1565) target = $region64
      $region63: #{tpu_custom_call.1} parent=5 // pred_region
        %s1568 = ssub.s32 %s14, 2
        // Predicated region
        $region65: #{tpu_custom_call.1} parent=63 // pred_check
          %p1569 = pneg %p172
        $region66: #{tpu_custom_call.1} parent=63 // pred_check_branch
          %1571 = sbr.rel (%p1569) target = $region68
        $region67: #{tpu_custom_call.1} parent=63 // pred_region
          %s1572 = sand.u32 %s157, 1
          %s1573 = scalar_lea.sflag [#allocation5], %s1572
          %s1574 = sand.u32 %s157, 1
          %s1575 = smul.addr %s1574, 256
          %s1576 = scalar_lea.vmem [#allocation4], %s1575
          %1578 = dma.done %s1573, 4096
        $region68: #{tpu_custom_call.1} parent=63 // pred_fallthru
          _
      $region64: #{tpu_custom_call.1} parent=5 // pred_fallthru
        _
    $region6: #{tpu_custom_call.1} parent=1 // loop_footer
      %s18 = sadd.s32 1, %s14
    $region7: #{tpu_custom_call.1} parent=1 // loop_footer_branch
      %13 = sbr.rel target = $region3
    $region8: #{tpu_custom_call.1} parent=1 // loop_exit
      _
    %1579 = vsyncpa [#allocation5], 1
    %s1580 = scalar_lea.sflag [#allocation5], 1
    %1581 = vsyncpa %s1580, 1

</llo_original>
